<compile_context>
chip_gen: v6e
topology: v6e:2x2x1
jax: 0.10.0
libtpu: 0.0.40
codegen_flags: <defaults>
</compile_context>

<pallas_src>
import functools

import jax
import jax.numpy as jnp
from jax import lax
from jax.experimental import pallas as pl
from jax.experimental.pallas import tpu as pltpu


_FAST_PATH_BYTES = 256 * 1024          # below this, plain XLA wins
_DEFAULT_CHUNK = 2048                  # lanes per in-kernel compute chunk
_STEP_STREAM_BYTES = 4 * 1024 * 1024   # target (x + y) bytes DMA'd per grid step
_VMEM_BUDGET = 24 * 1024 * 1024        # stay under v5e's scoped-VMEM ceiling
_MIN_GRID_STEPS = 8                    # keep v7x megacore + pipeline fed


# ----------------------------------------------------------------------------
# Pallas kernel
# ----------------------------------------------------------------------------
def _mlp_kernel(x_ref, w1t_ref, b1_ref, w2t_ref, b2_ref, o_ref, *, chunk):
    """y = W2blk @ relu(W1blk @ x + b1) + b2 on a (CP, TM) lane-dense tile.

    x_ref/o_ref : (CP, TM)   activations, spatial points on lanes
    w1t_ref     : (HIDP, CP) block-diagonal transposed layer-1 weights
    b1_ref      : (HIDP, 1)  f32
    w2t_ref     : (CP, HIDP) block-diagonal transposed layer-2 weights
    b2_ref      : (CP, 1)    f32
    The TM tile is processed in `chunk`-lane pieces so the (HIDP, chunk) f32
    intermediate stays small while the DMA'd tile stays large.
    """
    w1t = w1t_ref[...]
    w2t = w2t_ref[...]
    b1 = b1_ref[...]
    b2 = b2_ref[...]

    n_chunks = x_ref.shape[1] // chunk

    def compute_chunk(x):
        h = jnp.dot(w1t, x, preferred_element_type=jnp.float32)
        h = jnp.maximum(h + b1, 0.0)
        y = jnp.dot(w2t, h.astype(w2t.dtype), preferred_element_type=jnp.float32)
        return (y + b2).astype(o_ref.dtype)

    if n_chunks == 1:
        o_ref[...] = compute_chunk(x_ref[...])
    else:
        def body(c, carry):
            j = pl.multiple_of(c * chunk, chunk)
            o_ref[:, pl.ds(j, chunk)] = compute_chunk(x_ref[:, pl.ds(j, chunk)])
            return carry

        lax.fori_loop(0, n_chunks, body, 0)


# ----------------------------------------------------------------------------
# Tiling / packing heuristics
# ----------------------------------------------------------------------------
def _pack_factor(n, c, itemsize):
    """Largest divisor P of n with C*P <= sublanes of one native tile."""
    target_rows = max(8, 32 // max(itemsize, 1))   # 8 f32 / 16 bf16 / 32 int8
    best = 1
    for p in range(1, min(n, target_rows) + 1):
        if n % p == 0 and c * p <= target_rows:
            best = p
    return best


def _choose_tiles(m, n_groups, cp, hidp, itemsize):
    """Pick (tm, chunk): big streamed tile, bounded VMEM, enough grid steps."""
    if m <= _DEFAULT_CHUNK:
        return m, m
    chunk = _DEFAULT_CHUNK

    # Target ~4 MiB of streamed (x + y) bytes per grid step.
    tm = _STEP_STREAM_BYTES // (2 * cp * itemsize)

    # VMEM budget: double-buffered in + out tiles + f32 per-chunk intermediates.
    inter_bytes = 3 * hidp * chunk * 4
    avail = max(_VMEM_BUDGET - inter_bytes, 4 * cp * itemsize * chunk)
    tm = min(tm, avail // (4 * cp * itemsize))

    tm = min(tm, m)
    tm = max(chunk, (tm // chunk) * chunk)

    # Keep enough grid steps for v7x megacore sharding and the DMA pipeline.
    def steps(t):
        return n_groups * (-(-m // t))

    while steps(tm) < _MIN_GRID_STEPS and tm > chunk:
        tm = max(chunk, ((tm // 2) // chunk) * chunk)
    return tm, chunk


# ----------------------------------------------------------------------------
# Wrapper
# ----------------------------------------------------------------------------
def _pointwise_mlp_xla(x, w1, b1, w2, b2):
    """Plain-XLA fast path for tiny tensors (f32 math, result in x.dtype)."""
    hi = lax.Precision.HIGHEST
    xf = x.astype(jnp.float32)
    h = jnp.einsum("nchw,ck->nkhw", xf, w1.astype(jnp.float32), precision=hi)
    h = jnp.maximum(h + b1.reshape(1, -1, 1, 1).astype(jnp.float32), 0.0)
    y = jnp.einsum("nkhw,kc->nchw", h, w2.astype(jnp.float32), precision=hi)
    y = y + b2.reshape(1, -1, 1, 1).astype(jnp.float32)
    return y.astype(x.dtype)


def reaction_mlp_nchw(x, w1, b1, w2, b2):
    """Pointwise channel MLP on an NCHW tensor via a Pallas TPU kernel.

    x : (N, C, H, W)  float32 or bfloat16
    w1: (C, HIDDEN), b1: (1, HIDDEN), w2: (HIDDEN, C), b2: (1, C)  (f32)
    Returns (N, C, H, W) in x.dtype.
    """
    n, c, hh, ww = x.shape
    hid = w1.shape[1]
    m = hh * ww
    itemsize = jnp.dtype(x.dtype).itemsize

    # (6) tiny tensors: pallas dispatch + pipeline prologue dominates.
    if x.size * itemsize < _FAST_PATH_BYTES:
        return _pointwise_mlp_xla(x, w1, b1, w2, b2)

    compute_dtype = x.dtype if x.dtype in (jnp.bfloat16, jnp.float32) else jnp.float32

    # (3) pack P batch images into the channel axis (block-diagonal weights)
    # so the streamed block fills a full sublane tile.
    p = _pack_factor(n, c, itemsize)
    n_groups, cp, hidp = n // p, c * p, hid * p

    # NCHW row-major -> (N/P, P*C, H*W).  TODO(synk): verify in the HLO that
    # XLA does not insert a full relayout copy here; fuse into the producer if
    # it does.
    x3 = x.reshape(n_groups, cp, m).astype(compute_dtype)

    eye_p = jnp.eye(p, dtype=jnp.float32)
    w1t = jnp.kron(eye_p, jnp.transpose(w1).astype(jnp.float32)).astype(compute_dtype)
    w2t = jnp.kron(eye_p, jnp.transpose(w2).astype(jnp.float32)).astype(compute_dtype)
    b1c = jnp.tile(jnp.reshape(b1.astype(jnp.float32), (hid, 1)), (p, 1))
    b2c = jnp.tile(jnp.reshape(b2.astype(jnp.float32), (c, 1)), (p, 1))

    # (1)(2)(5) tile selection: big streamed tiles, bounded VMEM, >=8 steps.
    tm, chunk = _choose_tiles(m, n_groups, cp, hidp, itemsize)
    grid = (n_groups, pl.cdiv(m, tm))

    # (7) advisory cost estimate for XLA's scheduler.
    flops = 4 * c * hid * n * m
    bytes_accessed = (2 * x.size * itemsize
                      + (w1t.size + w2t.size) * jnp.dtype(compute_dtype).itemsize
                      + (b1c.size + b2c.size) * 4)

    kernel = functools.partial(_mlp_kernel, chunk=chunk)

    y3 = pl.pallas_call(
        kernel,
        out_shape=jax.ShapeDtypeStruct((n_groups, cp, m), x.dtype),
        grid_spec=pltpu.PrefetchScalarGridSpec(
            num_scalar_prefetch=0,
            grid=grid,
            in_specs=[
                # streamed activation tile: group dim squeezed, packed channels
                # on sublanes, spatial points lane-dense.  (Default double
                # buffering is enough once tiles are multi-MiB; deepen with
                # pipeline_mode=pl.Buffered(3) only if a profile shows exposed
                # DMA.)
                pl.BlockSpec((None, cp, tm), lambda g, i: (g, 0, i)),
                # resident parameters (constant index_map keeps them in VMEM).
                pl.BlockSpec((hidp, cp), lambda g, i: (0, 0)),
                pl.BlockSpec((hidp, 1), lambda g, i: (0, 0)),
                pl.BlockSpec((cp, hidp), lambda g, i: (0, 0)),
                pl.BlockSpec((cp, 1), lambda g, i: (0, 0)),
            ],
            out_specs=pl.BlockSpec((None, cp, tm), lambda g, i: (g, 0, i)),
        ),
        compiler_params=pltpu.CompilerParams(
            dimension_semantics=("parallel", "parallel"),
            vmem_limit_bytes=32 * 1024 * 1024,
        ),
        cost_estimate=pl.CostEstimate(
            flops=flops, transcendentals=0, bytes_accessed=bytes_accessed),
    )(x3, w1t, b1c, w2t, b2c)

    return y3.reshape(n, c, hh, ww)


# ----------------------------------------------------------------------------
# Module port
# ----------------------------------------------------------------------------
class Reaction:
    """JAX/Pallas port of the ml_dns Reaction module."""

    def __init__(self, nn_params=None, use_nn=False):
        self.nn_params = nn_params    # dict: w1, b1, w2, b2
        self.use_nn = use_nn

    def __call__(self, x):
        if self.use_nn and self.nn_params:
            return reaction_mlp_nchw(
                x,
                self.nn_params["w1"], self.nn_params["b1"],
                self.nn_params["w2"], self.nn_params["b2"],
            )
        # PyTorch `pass` -> returns None
        return None


# ----------------------------------------------------------------------------
# Self-test
# ----------------------------------------------------------------------------
def _make_params(key, c, hidden):
    k1, k2, k3, k4 = jax.random.split(key, 4)
    return {
        "w1": jax.random.normal(k1, (c, hidden), jnp.float32) * 0.1,
        "b1": jax.random.normal(k2, (1, hidden), jnp.float32) * 0.1,
        "w2": jax.random.normal(k3, (hidden, c), jnp.float32) * 0.1,
        "b2": jax.random.normal(k4, (1, c), jnp.float32) * 0.1,
    }


def _reference(x, p):
    """Independent pure-JAX reference (channels-last, f32, highest precision)."""
    hi = lax.Precision.HIGHEST
    n, c, hh, ww = x.shape
    xr = jnp.transpose(x.astype(jnp.float32), (0, 2, 3, 1)).reshape(-1, c)
    h = jnp.maximum(jnp.dot(xr, p["w1"], precision=hi) + p["b1"], 0.0)
    y = jnp.dot(h, p["w2"], precision=hi) + p["b2"]
    return y.reshape(n, hh, ww, c).transpose(0, 3, 1, 2)


if __name__ == "__main__":
    key = jax.random.PRNGKey(0)
    kx, kp, kx2 = jax.random.split(key, 3)

    C, HIDDEN = 4, 32
    params = _make_params(kp, C, HIDDEN)

    # use_nn=False path: returns None (matches PyTorch `pass`)
    x_small = jax.random.normal(kx, (2, C, 16, 16), jnp.float32)
    assert Reaction(use_nn=False)(x_small) is None

    model = Reaction(nn_params=params, use_nn=True)

    # small input -> XLA fast path
    y_small = jax.block_until_ready(model(x_small))
    assert y_small.shape == x_small.shape
    assert jnp.allclose(y_small, _reference(x_small, params), atol=1e-4, rtol=1e-4)

    # f32 input large enough to exercise the Pallas path (packed, tiled)
    x_f32 = jax.random.normal(kx2, (2, C, 128, 256), jnp.float32)
    y_f32 = jax.block_until_ready(model(x_f32))
    assert y_f32.shape == x_f32.shape
    assert jnp.allclose(y_f32, _reference(x_f32, params), atol=2e-2, rtol=2e-2)

    # bf16 streaming path (f32 accumulation in-kernel)
    x_bf16 = x_f32.astype(jnp.bfloat16)
    y_bf16 = jax.block_until_ready(model(x_bf16))
    assert y_bf16.dtype == jnp.bfloat16
    y_bf16_ref = _reference(x_bf16.astype(jnp.float32), params)
    assert jnp.allclose(y_bf16.astype(jnp.float32), y_bf16_ref, atol=0.1, rtol=0.1)

    print("KERNEL_OK")
</pallas_src>

<mosaic_0001>
module attributes {stable_mosaic.version = 11 : i64} {
  func.func @_mlp_kernel(%arg0: i32, %arg1: i32, %arg2: memref<1x8x4096xf32, #tpu.memory_space<vmem>>, %arg3: memref<64x8xf32, #tpu.memory_space<vmem>>, %arg4: memref<64x1xf32, #tpu.memory_space<vmem>>, %arg5: memref<8x64xf32, #tpu.memory_space<vmem>>, %arg6: memref<8x1xf32, #tpu.memory_space<vmem>>, %arg7: memref<1x8x4096xf32, #tpu.memory_space<vmem>>) attributes {dimension_semantics = [#tpu.dimension_semantics<parallel>, #tpu.dimension_semantics<parallel>], iteration_bounds = array<i64: 1, 8>, scalar_prefetch = 0 : i64, scratch_operands = 0 : i64, tpu.core_type = #tpu.core_type<tc>, window_params = [{transform_indices = @transform_0, window_bounds = array<i64: 1, 8, 4096>}, {pipeline_mode = #tpu.pipeline_mode<synchronous>, transform_indices = @transform_1, window_bounds = array<i64: 64, 8>}, {pipeline_mode = #tpu.pipeline_mode<synchronous>, transform_indices = @transform_2, window_bounds = array<i64: 64, 1>}, {pipeline_mode = #tpu.pipeline_mode<synchronous>, transform_indices = @transform_3, window_bounds = array<i64: 8, 64>}, {pipeline_mode = #tpu.pipeline_mode<synchronous>, transform_indices = @transform_4, window_bounds = array<i64: 8, 1>}, {transform_indices = @transform_5, window_bounds = array<i64: 1, 8, 4096>}]} {
    %c0 = arith.constant 0 : index
    %c0_0 = arith.constant 0 : index
    %0 = vector.load %arg3[%c0, %c0_0] : memref<64x8xf32, #tpu.memory_space<vmem>>, vector<64x8xf32>
    %c0_1 = arith.constant 0 : index
    %c0_2 = arith.constant 0 : index
    %1 = vector.load %arg5[%c0_1, %c0_2] : memref<8x64xf32, #tpu.memory_space<vmem>>, vector<8x64xf32>
    %c0_3 = arith.constant 0 : index
    %c0_4 = arith.constant 0 : index
    %2 = vector.load %arg4[%c0_3, %c0_4] : memref<64x1xf32, #tpu.memory_space<vmem>>, vector<64x1xf32>
    %c0_5 = arith.constant 0 : index
    %c0_6 = arith.constant 0 : index
    %3 = vector.load %arg6[%c0_5, %c0_6] : memref<8x1xf32, #tpu.memory_space<vmem>>, vector<8x1xf32>
    %c0_i32 = arith.constant 0 : i32
    %c2_i32 = arith.constant 2 : i32
    %4 = arith.addi %c0_i32, %c2_i32 : i32
    %c1_i32 = arith.constant 1 : i32
    scf.for %arg8 = %c0_i32 to %4 step %c1_i32  : i32 {
      %c2048_i32 = arith.constant 2048 : i32
      %5 = arith.muli %arg8, %c2048_i32 : i32
      %6 = tpu.assume_multiple %5, 2048 : i32
      %c0_8 = arith.constant 0 : index
      %c0_9 = arith.constant 0 : index
      %7 = arith.index_cast %6 : i32 to index
      %8 = vector.load %arg2[%c0_8, %c0_9, %7] : memref<1x8x4096xf32, #tpu.memory_space<vmem>>, vector<1x8x2048xf32>
      %9 = vector.shape_cast %8 : vector<1x8x2048xf32> to vector<8x2048xf32>
      %cst = arith.constant dense<0.000000e+00> : vector<64x2048xf32>
      %10 = tpu.matmul %0, %9, %cst {dimension_numbers = #tpu.dot_dimension_numbers<[1], [0], [0], [1], [0, 0, 1, 1], [], []>} : vector<64x8xf32>, vector<8x2048xf32>, vector<64x2048xf32> -> vector<64x2048xf32>
      %11 = vector.broadcast %2 : vector<64x1xf32> to vector<64x2048xf32>
      %12 = arith.addf %10, %11 : vector<64x2048xf32>
      %cst_10 = arith.constant 0.000000e+00 : f32
      %13 = vector.broadcast %cst_10 : f32 to vector<64x2048xf32>
      %14 = arith.maximumf %12, %13 : vector<64x2048xf32>
      %cst_11 = arith.constant dense<0.000000e+00> : vector<8x2048xf32>
      %15 = tpu.matmul %1, %14, %cst_11 {dimension_numbers = #tpu.dot_dimension_numbers<[1], [0], [0], [1], [0, 0, 1, 1], [], []>} : vector<8x64xf32>, vector<64x2048xf32>, vector<8x2048xf32> -> vector<8x2048xf32>
      %16 = vector.broadcast %3 : vector<8x1xf32> to vector<8x2048xf32>
      %17 = arith.addf %15, %16 : vector<8x2048xf32>
      %c0_12 = arith.constant 0 : index
      %c0_13 = arith.constant 0 : index
      %18 = arith.index_cast %6 : i32 to index
      %19 = vector.load %arg7[%c0_12, %c0_13, %18] : memref<1x8x4096xf32, #tpu.memory_space<vmem>>, vector<1x8x2048xf32>
      %20 = vector.shape_cast %19 : vector<1x8x2048xf32> to vector<8x2048xf32>
      %21 = vector.shape_cast %17 : vector<8x2048xf32> to vector<1x8x2048xf32>
      tpu.vector_store %arg7[%c0_12, %c0_13, %18], %21 {strides = array<i32>} : memref<1x8x4096xf32, #tpu.memory_space<vmem>>, vector<1x8x2048xf32>,
    }
    %c2_i32_7 = arith.constant 2 : i32
    return
  }
  func.func @transform_0(%arg0: i32, %arg1: i32) -> (i32, i32, i32) {
    %c0_i32 = arith.constant 0 : i32
    %c0_i32_0 = arith.constant 0 : i32
    return %arg0, %c0_i32, %arg1 : i32, i32, i32
  }
  func.func @transform_1(%arg0: i32, %arg1: i32) -> (i32, i32) {
    %c0_i32 = arith.constant 0 : i32
    %c0_i32_0 = arith.constant 0 : i32
    %c0_i32_1 = arith.constant 0 : i32
    return %c0_i32, %c0_i32_0 : i32, i32
  }
  func.func @transform_2(%arg0: i32, %arg1: i32) -> (i32, i32) {
    %c0_i32 = arith.constant 0 : i32
    %c0_i32_0 = arith.constant 0 : i32
    %c0_i32_1 = arith.constant 0 : i32
    return %c0_i32, %c0_i32_0 : i32, i32
  }
  func.func @transform_3(%arg0: i32, %arg1: i32) -> (i32, i32) {
    %c0_i32 = arith.constant 0 : i32
    %c0_i32_0 = arith.constant 0 : i32
    %c0_i32_1 = arith.constant 0 : i32
    return %c0_i32, %c0_i32_0 : i32, i32
  }
  func.func @transform_4(%arg0: i32, %arg1: i32) -> (i32, i32) {
    %c0_i32 = arith.constant 0 : i32
    %c0_i32_0 = arith.constant 0 : i32
    %c0_i32_1 = arith.constant 0 : i32
    return %c0_i32, %c0_i32_0 : i32, i32
  }
  func.func @transform_5(%arg0: i32, %arg1: i32) -> (i32, i32, i32) {
    %c0_i32 = arith.constant 0 : i32
    %c0_i32_0 = arith.constant 0 : i32
    return %arg0, %c0_i32, %arg1 : i32, i32, i32
  }
}

</mosaic_0001>

<llo_original>
// kernel: tpu_custom_call.1
$region0: #{tpu_custom_call.1}
  #allocation0 [shape = 'u32[]', space=smem, size = 0x4, offset = 0x4, fixed_abs, tag = 'smem constant byte address 0x4 - core index']
  #allocation1 [shape = 'u32[144,128]{1,0:T(1,128)}', space=vmem, size = 0x12000, scoped, tag = 'internal scratch']
  %s0 = inlined_call_operand.hbm [shape: f32[1,8,32768], index: 0, kind: input, shape index: {}]
  %s1 = inlined_call_operand.vmem [shape: f32[64,8], index: 1, kind: input, shape index: {}]
  %s2 = inlined_call_operand.vmem [shape: f32[64,1], index: 2, kind: input, shape index: {}]
  %s3 = inlined_call_operand.vmem [shape: f32[8,64], index: 3, kind: input, shape index: {}]
  %s4 = inlined_call_operand.vmem [shape: f32[8,1], index: 4, kind: input, shape index: {}]
  %s5 = inlined_call_operand.hbm [shape: f32[1,8,32768], index: 5, kind: output, shape index: {}]
  %s6 = sld [smem:[#allocation0]]
  $region64: #{tpu_custom_call.1} parent=0
    _
  %s8 = ssub.s32 1, %s6
  %s9 = scalar_select 0, %s8, %s6
  $region1: #{tpu_custom_call.1} parent=0
    #allocation2 [shape = 'u8[262144]{0}', space=vmem, size = 0x40000, scoped, tag = 'input window, operand 0']
    #allocation3 [shape = 's32[2]{0}', space=sflag, size = 0x8, scoped, tag = 'scoped memory for tpu_custom_call.1']
    #allocation4 [shape = 's32[2]{0}', space=sflag, size = 0x8, scoped, tag = 'scoped memory for tpu_custom_call.1']
    #allocation5 [shape = 'u8[262144]{0}', space=vmem, size = 0x40000, scoped, tag = 'output window, operand 0']
    %10 = vsyncpa [#allocation3], 0
    %s11 = scalar_lea.sflag [#allocation3], 1
    %12 = vsyncpa %s11, 0
    %13 = vsyncpa [#allocation4], 0
    %s14 = scalar_lea.sflag [#allocation4], 1
    %15 = vsyncpa %s14, 0
    loop: start=0, step=1, limit=10
    $region2: #{tpu_custom_call.1} parent=1 // loop_pre_header
      _
    $region3: #{tpu_custom_call.1} parent=1 // loop_header
      %s17 = sphi 0, %s21
      %p18 = scmp.ge.s32.totalorder %s17, 10
      %s24 = sphi 0, %s36
      %s25 = sphi 0, %s32
      %s26 = sphi 0, %s24
      %s27 = sphi 0, %s25
      %s28 = sphi 0, %s26
      %s29 = sphi 0, %s27
      %s41 = sphi 0, %s43
      %s44 = sphi 0, %s41
      %s45 = sphi 0, %s44
      %s61 = sphi 0, %s45
      %s65 = sphi 0, %s65
      %s67 = sphi 0, %s65
      %s68 = sphi 0, %s67
      %s82 = sphi 0, %s68
      %s86 = sphi 0, %s86
      %s88 = sphi 0, %s86
      %s89 = sphi 0, %s88
      %s103 = sphi 0, %s89
      %s107 = sphi 0, %s107
      %s109 = sphi 0, %s107
      %s110 = sphi 0, %s109
      %s124 = sphi 0, %s110
      %s128 = sphi 0, %s128
      %s130 = sphi 0, %s128
      %s131 = sphi 0, %s130
      %s145 = sphi 0, %s131
      %s153 = sphi 0, %s155
      %s156 = sphi 0, %s153
      %s157 = sphi 0, %s156
      %s173 = sphi 0, %s157
    $region4: #{tpu_custom_call.1} parent=1 // loop_header_branch
      %20 = sbr.rel (%p18) target = $region8
    $region5: #{tpu_custom_call.1} parent=1 // loop_body
      %s22 = ssub.s32 %s17, 1
      %s23 = ssub.s32 %s17, 2
      %s30 = sadd.s32 1, %s25
      %p31 = scmp.ge.s32.totalorder %s30, 8
      %s32 = scalar_select %p31, 0, %s30
      %s33 = sadd.s32 1, %s24
      %s34 = scalar_select %p31, %s33, %s24
      %p35 = scmp.ge.s32.totalorder %s34, 1
      %s36 = scalar_select %p35, 0, %s34
      %s37 = ssub.s32 %s24, %s36
      %s38 = ssub.s32 %s25, %s32
      %s39 = sor.u32 %s37, %s38
      %p40 = scmp.eq.s32.totalorder %s39, 0
      %s42 = sadd.s32 %s41, 1
      %s43 = scalar_select %p40, %s41, %s42
      %p46 = pneg %p40
      %p47 = scmp.eq.s32.totalorder %s17, 7
      %p48 = por %p46, %p47
      %p49 = scmp.ne.s32.totalorder %s41, %s44
      %p50 = scmp.eq.s32.totalorder %s17, 0
      %p51 = por %p49, %p50
      %p52 = scmp.ne.s32.totalorder %s41, %s44
      %p53 = scmp.eq.s32.totalorder %s22, 7
      %p54 = por %p52, %p53
      %p55 = scmp.ne.s32.totalorder %s44, %s45
      %p56 = scmp.eq.s32.totalorder %s22, 0
      %p57 = por %p55, %p56
      %p58 = scmp.ne.s32.totalorder %s44, %s45
      %p59 = scmp.eq.s32.totalorder %s23, 7
      %p60 = por %p58, %p59
      %p62 = scmp.ne.s32.totalorder %s45, %s61
      %p63 = scmp.eq.s32.totalorder %s23, 0
      %p64 = por %p62, %p63
      %s66 = sadd.s32 %s65, 1
      %p69 = scmp.eq.s32.totalorder %s17, 7
      %p70 = scmp.ne.s32.totalorder %s65, %s67
      %p71 = scmp.eq.s32.totalorder %s17, 0
      %p72 = por %p70, %p71
      %p73 = scmp.ne.s32.totalorder %s65, %s67
      %p74 = scmp.eq.s32.totalorder %s22, 7
      %p75 = por %p73, %p74
      %p76 = scmp.ne.s32.totalorder %s67, %s68
      %p77 = scmp.eq.s32.totalorder %s22, 0
      %p78 = por %p76, %p77
      %p79 = scmp.ne.s32.totalorder %s67, %s68
      %p80 = scmp.eq.s32.totalorder %s23, 7
      %p81 = por %p79, %p80
      %p83 = scmp.ne.s32.totalorder %s68, %s82
      %p84 = scmp.eq.s32.totalorder %s23, 0
      %p85 = por %p83, %p84
      %s87 = sadd.s32 %s86, 1
      %p90 = scmp.eq.s32.totalorder %s17, 7
      %p91 = scmp.ne.s32.totalorder %s86, %s88
      %p92 = scmp.eq.s32.totalorder %s17, 0
      %p93 = por %p91, %p92
      %p94 = scmp.ne.s32.totalorder %s86, %s88
      %p95 = scmp.eq.s32.totalorder %s22, 7
      %p96 = por %p94, %p95
      %p97 = scmp.ne.s32.totalorder %s88, %s89
      %p98 = scmp.eq.s32.totalorder %s22, 0
      %p99 = por %p97, %p98
      %p100 = scmp.ne.s32.totalorder %s88, %s89
      %p101 = scmp.eq.s32.totalorder %s23, 7
      %p102 = por %p100, %p101
      %p104 = scmp.ne.s32.totalorder %s89, %s103
      %p105 = scmp.eq.s32.totalorder %s23, 0
      %p106 = por %p104, %p105
      %s108 = sadd.s32 %s107, 1
      %p111 = scmp.eq.s32.totalorder %s17, 7
      %p112 = scmp.ne.s32.totalorder %s107, %s109
      %p113 = scmp.eq.s32.totalorder %s17, 0
      %p114 = por %p112, %p113
      %p115 = scmp.ne.s32.totalorder %s107, %s109
      %p116 = scmp.eq.s32.totalorder %s22, 7
      %p117 = por %p115, %p116
      %p118 = scmp.ne.s32.totalorder %s109, %s110
      %p119 = scmp.eq.s32.totalorder %s22, 0
      %p120 = por %p118, %p119
      %p121 = scmp.ne.s32.totalorder %s109, %s110
      %p122 = scmp.eq.s32.totalorder %s23, 7
      %p123 = por %p121, %p122
      %p125 = scmp.ne.s32.totalorder %s110, %s124
      %p126 = scmp.eq.s32.totalorder %s23, 0
      %p127 = por %p125, %p126
      %s129 = sadd.s32 %s128, 1
      %p132 = scmp.eq.s32.totalorder %s17, 7
      %p133 = scmp.ne.s32.totalorder %s128, %s130
      %p134 = scmp.eq.s32.totalorder %s17, 0
      %p135 = por %p133, %p134
      %p136 = scmp.ne.s32.totalorder %s128, %s130
      %p137 = scmp.eq.s32.totalorder %s22, 7
      %p138 = por %p136, %p137
      %p139 = scmp.ne.s32.totalorder %s130, %s131
      %p140 = scmp.eq.s32.totalorder %s22, 0
      %p141 = por %p139, %p140
      %p142 = scmp.ne.s32.totalorder %s130, %s131
      %p143 = scmp.eq.s32.totalorder %s23, 7
      %p144 = por %p142, %p143
      %p146 = scmp.ne.s32.totalorder %s131, %s145
      %p147 = scmp.eq.s32.totalorder %s23, 0
      %p148 = por %p146, %p147
      %s149 = ssub.s32 %s24, %s36
      %s150 = ssub.s32 %s25, %s32
      %s151 = sor.u32 %s149, %s150
      %p152 = scmp.eq.s32.totalorder %s151, 0
      %s154 = sadd.s32 %s153, 1
      %s155 = scalar_select %p152, %s153, %s154
      %p158 = pneg %p152
      %p159 = scmp.eq.s32.totalorder %s17, 7
      %p160 = por %p158, %p159
      %p161 = scmp.ne.s32.totalorder %s153, %s156
      %p162 = scmp.eq.s32.totalorder %s17, 0
      %p163 = por %p161, %p162
      %p164 = scmp.ne.s32.totalorder %s153, %s156
      %p165 = scmp.eq.s32.totalorder %s22, 7
      %p166 = por %p164, %p165
      %p167 = scmp.ne.s32.totalorder %s156, %s157
      %p168 = scmp.eq.s32.totalorder %s22, 0
      %p169 = por %p167, %p168
      %p170 = scmp.ne.s32.totalorder %s156, %s157
      %p171 = scmp.eq.s32.totalorder %s23, 7
      %p172 = por %p170, %p171
      %p174 = scmp.ne.s32.totalorder %s157, %s173
      %p175 = scmp.eq.s32.totalorder %s23, 0
      %p176 = por %p174, %p175
      %p177 = scmp.le.s32.totalorder 1, %s17
      %p178 = scmp.lt.s32.totalorder %s17, 9
      %p179 = pnand %p177, %p178
      %p180 = pneg %p179
      // Predicated region
      $region9: #{tpu_custom_call.1} parent=5 // pred_check
        _
      $region10: #{tpu_custom_call.1} parent=5 // pred_check_branch
        %182 = sbr.rel (%p179) target = $region12
      $region11: #{tpu_custom_call.1} parent=5 // pred_region
        %s183 = ssub.s32 %s17, 1
        // Predicated region
        $region13: #{tpu_custom_call.1} parent=11 // pred_check
          %p184 = pneg %p78
        $region14: #{tpu_custom_call.1} parent=11 // pred_check_branch
          %186 = sbr.rel (%p184) target = $region16
        $region15: #{tpu_custom_call.1} parent=11 // pred_region
          _
        $region16: #{tpu_custom_call.1} parent=11 // pred_fallthru
          _
        // Predicated region
        $region17: #{tpu_custom_call.1} parent=11 // pred_check
          %p187 = pneg %p99
        $region18: #{tpu_custom_call.1} parent=11 // pred_check_branch
          %189 = sbr.rel (%p187) target = $region20
        $region19: #{tpu_custom_call.1} parent=11 // pred_region
          _
        $region20: #{tpu_custom_call.1} parent=11 // pred_fallthru
          _
        // Predicated region
        $region21: #{tpu_custom_call.1} parent=11 // pred_check
          %p190 = pneg %p120
        $region22: #{tpu_custom_call.1} parent=11 // pred_check_branch
          %192 = sbr.rel (%p190) target = $region24
        $region23: #{tpu_custom_call.1} parent=11 // pred_region
          _
        $region24: #{tpu_custom_call.1} parent=11 // pred_fallthru
          _
        // Predicated region
        $region25: #{tpu_custom_call.1} parent=11 // pred_check
          %p193 = pneg %p141
        $region26: #{tpu_custom_call.1} parent=11 // pred_check_branch
          %195 = sbr.rel (%p193) target = $region28
        $region27: #{tpu_custom_call.1} parent=11 // pred_region
          _
        $region28: #{tpu_custom_call.1} parent=11 // pred_fallthru
          _
      $region12: #{tpu_custom_call.1} parent=5 // pred_fallthru
        _
      %p196 = scmp.lt.s32.totalorder %s17, 8
      // Predicated region
      $region29: #{tpu_custom_call.1} parent=5 // pred_check
        %p197 = pneg %p196
      $region30: #{tpu_custom_call.1} parent=5 // pred_check_branch
        %199 = sbr.rel (%p197) target = $region32
      $region31: #{tpu_custom_call.1} parent=5 // pred_region
        // Predicated region
        $region33: #{tpu_custom_call.1} parent=31 // pred_check
          %p200 = pneg %p51
        $region34: #{tpu_custom_call.1} parent=31 // pred_check_branch
          %202 = sbr.rel (%p200) target = $region36
        $region35: #{tpu_custom_call.1} parent=31 // pred_region
          %s203 = sand.u32 %s41, 1
          %s204 = scalar_lea.sflag [#allocation3], %s203
          %s205 = sand.u32 %s41, 1
          %s206 = smul.addr %s205, 256
          %s207 = scalar_lea.vmem [#allocation2], %s206
          %s208 = smul.u32 32, %s25
          %s210 = ssub.s32 4096, 4096
          %211 = vsyncadd %s204, %s210
          %s212 = smul.addr %s24, 256
          %s213 = sadd.s32 %s208, %s212
          %s214 = smul.addr %s213, 128
          %s215 = scalar_lea.hbm %s0, %s214
          %s217 = sshll.u32 %s207, 4
          %s218 = int_to_ptr.vmem [resolvable:$true] %s217
          %220 = dma.hbm_to_vmem [thread:$0]  %s215, 4096, %s218, %s204
        $region36: #{tpu_custom_call.1} parent=31 // pred_fallthru
          _
      $region32: #{tpu_custom_call.1} parent=5 // pred_fallthru
        _
      %p221 = scmp.le.s32.totalorder 1, %s17
      %p222 = scmp.lt.s32.totalorder %s17, 9
      %p223 = pnand %p221, %p222
      %p224 = pneg %p223
      // Predicated region
      $region37: #{tpu_custom_call.1} parent=5 // pred_check
        _
      $region38: #{tpu_custom_call.1} parent=5 // pred_check_branch
        %226 = sbr.rel (%p223) target = $region40
      $region39: #{tpu_custom_call.1} parent=5 // pred_region
        %s227 = ssub.s32 %s17, 1
        %s228 = sand.u32 %s44, 1
        %s229 = scalar_lea.sflag [#allocation3], %s228
        %s230 = sand.u32 %s44, 1
        %s231 = smul.addr %s230, 256
        %s232 = scalar_lea.vmem [#allocation2], %s231
        // Predicated region
        $region41: #{tpu_custom_call.1} parent=39 // pred_check
          %p233 = pneg %p57
        $region42: #{tpu_custom_call.1} parent=39 // pred_check_branch
          %235 = sbr.rel (%p233) target = $region44
        $region43: #{tpu_custom_call.1} parent=39 // pred_region
          %236 = dma.done %s229, 4096
        $region44: #{tpu_custom_call.1} parent=39 // pred_fallthru
          _
        %s237 = sand.u32 %s44, 1
        %s238 = scalar_lea.sflag [#allocation3], %s237
        %s239 = sand.u32 %s44, 1
        %s240 = smul.addr %s239, 256
        %s241 = scalar_lea.vmem [#allocation2], %s240
        %p242 = pneg %p57
        %p243 = pneg %p54
        %p244 = pneg %p78
        %p245 = pneg %p75
        %p246 = pneg %p99
        %p247 = pneg %p96
        %p248 = pneg %p120
        %p249 = pneg %p117
        %p250 = pneg %p141
        %p251 = pneg %p138
        %p252 = pneg %p169
        %p253 = pneg %p166
        %s254 = sand.u32 %s156, 1
        %s255 = scalar_lea.sflag [#allocation4], %s254
        %s256 = sand.u32 %s156, 1
        %s257 = smul.addr %s256, 256
        %s258 = scalar_lea.vmem [#allocation5], %s257
        %s259 = smul.u32 32, %s27
        %s260 = smul.u32 32, %s27
        %v261 = vld [vmem:[%s1] sm:$0xff]
        %v262 = vld [vmem:[%s1 + $0x8] sm:$0xff]
        %v263 = vld [vmem:[%s1 + $0x10] sm:$0xff]
        %v264 = vld [vmem:[%s1 + $0x18] sm:$0xff]
        %v265 = vld [vmem:[%s1 + $0x20] sm:$0xff]
        %v266 = vld [vmem:[%s1 + $0x28] sm:$0xff]
        %v267 = vld [vmem:[%s1 + $0x30] sm:$0xff]
        %v268 = vld [vmem:[%s1 + $0x38] sm:$0xff]
        %v269 = vld [vmem:[%s3] sm:$0xff]
        %v270 = vld [vmem:[%s2] sm:$0xff]
        %v271 = vld [vmem:[%s2 + $0x8] sm:$0xff]
        %v272 = vld [vmem:[%s2 + $0x10] sm:$0xff]
        %v273 = vld [vmem:[%s2 + $0x18] sm:$0xff]
        %v274 = vld [vmem:[%s2 + $0x20] sm:$0xff]
        %v275 = vld [vmem:[%s2 + $0x28] sm:$0xff]
        %v276 = vld [vmem:[%s2 + $0x30] sm:$0xff]
        %v277 = vld [vmem:[%s2 + $0x38] sm:$0xff]
        %v278 = vld [vmem:[%s4] sm:$0xff]
        loop: start=0, step=1, limit=2
        $region45: #{tpu_custom_call.1} parent=39 // loop_pre_header
          _
        $region46: #{tpu_custom_call.1} parent=39 // loop_header
          %s280 = sphi 0, %s284
          %p281 = scmp.ge.s32.totalorder %s280, 2
        $region47: #{tpu_custom_call.1} parent=39 // loop_header_branch
          %283 = sbr.rel (%p281) target = $region51
        $region48: #{tpu_custom_call.1} parent=39 // loop_body
          %s285 = smul.u32 %s280, 2048
          %s286 = sshra.s32 %s285, 7
          %s287 = sand.u32 %s285, 127
          %s288 = smul.addr %s286, 8
          %s289 = scalar_lea.vmem %s232, %s288 [#allocation2]
          %v290 = vld [vmem:[%s289] sm:$0xff]
          %v291 = vld [vmem:[%s289 + $0x8] sm:$0xff]
          %v292 = vld [vmem:[%s289 + $0x10] sm:$0xff]
          %v293 = vld [vmem:[%s289 + $0x18] sm:$0xff]
          %v294 = vld [vmem:[%s289 + $0x20] sm:$0xff]
          %v295 = vld [vmem:[%s289 + $0x28] sm:$0xff]
          %v296 = vld [vmem:[%s289 + $0x30] sm:$0xff]
          %v297 = vld [vmem:[%s289 + $0x38] sm:$0xff]
          %v298 = vld [vmem:[%s289 + $0x40] sm:$0xff]
          %v299 = vld [vmem:[%s289 + $0x48] sm:$0xff]
          %v300 = vld [vmem:[%s289 + $0x50] sm:$0xff]
          %v301 = vld [vmem:[%s289 + $0x58] sm:$0xff]
          %v302 = vld [vmem:[%s289 + $0x60] sm:$0xff]
          %v303 = vld [vmem:[%s289 + $0x68] sm:$0xff]
          %v304 = vld [vmem:[%s289 + $0x70] sm:$0xff]
          %v305 = vld [vmem:[%s289 + $0x78] sm:$0xff]
          %307 = vset.pattern.permute.xlu0 0
          %308 = vperm.xlu0 %307, %v270
          %v309 = vpop.permute.xlu0 %308
          %312 = vset.pattern.permute.xlu0 0
          %313 = vperm.xlu0 %312, %v271
          %v314 = vpop.permute.xlu0 %313
          %317 = vset.pattern.permute.xlu0 0
          %318 = vperm.xlu0 %317, %v272
          %v319 = vpop.permute.xlu0 %318
          %322 = vset.pattern.permute.xlu0 0
          %323 = vperm.xlu0 %322, %v273
          %v324 = vpop.permute.xlu0 %323
          %327 = vset.pattern.permute.xlu0 0
          %328 = vperm.xlu0 %327, %v274
          %v329 = vpop.permute.xlu0 %328
          %332 = vset.pattern.permute.xlu0 0
          %333 = vperm.xlu0 %332, %v275
          %v334 = vpop.permute.xlu0 %333
          %337 = vset.pattern.permute.xlu0 0
          %338 = vperm.xlu0 %337, %v276
          %v339 = vpop.permute.xlu0 %338
          %342 = vset.pattern.permute.xlu0 0
          %343 = vperm.xlu0 %342, %v277
          %v344 = vpop.permute.xlu0 %343
          %vm346 = vcmask 64512
          %v348 = vsel %vm346, %v261, 0
          %v351 = vsel %vm346, %v262, 0
          %v354 = vsel %vm346, %v263, 0
          %v357 = vsel %vm346, %v264, 0
          %v360 = vsel %vm346, %v265, 0
          %v363 = vsel %vm346, %v266, 0
          %v366 = vsel %vm346, %v267, 0
          %v369 = vsel %vm346, %v268, 0
          %371 = vmatprep.subr.mxu0 0.0
          %372 = vmatpush1.msra.mxu0 0.0
          %373 = vmatprep.subr.mxu0 0.0
          %374 = vmatpush1.msra.mxu0 0.0
          %375 = vmatprep.subr.mxu0 0.0
          %376 = vmatpush1.msra.mxu0 0.0
          %377 = vmatprep.subr.mxu0 0.0
          %378 = vmatpush1.msra.mxu0 0.0
          %379 = vmatprep.subr.mxu0 0.0
          %380 = vmatpush1.msra.mxu0 0.0
          %381 = vmatprep.subr.mxu0 0.0
          %382 = vmatpush1.msra.mxu0 0.0
          %383 = vmatprep.subr.mxu0 0.0
          %384 = vmatpush1.msra.mxu0 0.0
          %385 = vmatprep.subr.mxu0 0.0
          %386 = vmatpush1.msra.mxu0 0.0
          %387 = vmatprep.subr.mxu0 0.0
          %388 = vmatpush1.msra.mxu0 0.0
          %389 = vmatprep.subr.mxu0 0.0
          %390 = vmatpush1.msra.mxu0 0.0
          %391 = vmatprep.subr.mxu0 0.0
          %392 = vmatpush1.msra.mxu0 0.0
          %393 = vmatprep.subr.mxu0 0.0
          %394 = vmatpush1.msra.mxu0 0.0
          %395 = vmatprep.subr.mxu0 0.0
          %396 = vmatpush1.msra.mxu0 0.0
          %397 = vmatprep.subr.mxu0 0.0
          %398 = vmatpush1.msra.mxu0 0.0
          %399 = vmatprep.subr.mxu0 0.0
          %400 = vmatpush1.msra.mxu0 0.0
          %401 = vmatprep.subr.mxu0 %v291
          %402 = vmatpush1.msra.mxu0 %v290
          %403 = vmatprep.subr.mxu0 0.0
          %404 = vmatpush2.msra.mxu0 0.0
          %405 = vmatprep.subr.mxu0 0.0
          %406 = vmatpush2.msra.mxu0 0.0
          %407 = vmatprep.subr.mxu0 0.0
          %408 = vmatpush2.msra.mxu0 0.0
          %409 = vmatprep.subr.mxu0 0.0
          %410 = vmatpush2.msra.mxu0 0.0
          %411 = vmatprep.subr.mxu0 0.0
          %412 = vmatpush2.msra.mxu0 0.0
          %413 = vmatprep.subr.mxu0 0.0
          %414 = vmatpush2.msra.mxu0 0.0
          %415 = vmatprep.subr.mxu0 0.0
          %416 = vmatpush2.msra.mxu0 0.0
          %417 = vmatprep.subr.mxu0 0.0
          %418 = vmatpush2.msra.mxu0 0.0
          %419 = vmatprep.subr.mxu0 0.0
          %420 = vmatpush2.msra.mxu0 0.0
          %421 = vmatprep.subr.mxu0 0.0
          %422 = vmatpush2.msra.mxu0 0.0
          %423 = vmatprep.subr.mxu0 0.0
          %424 = vmatpush2.msra.mxu0 0.0
          %425 = vmatprep.subr.mxu0 0.0
          %426 = vmatpush2.msra.mxu0 0.0
          %427 = vmatprep.subr.mxu0 0.0
          %428 = vmatpush2.msra.mxu0 0.0
          %429 = vmatprep.subr.mxu0 0.0
          %430 = vmatpush2.msra.mxu0 0.0
          %431 = vmatprep.subr.mxu0 0.0
          %432 = vmatpush2.msra.mxu0 0.0
          %433 = vmatprep.subr.mxu0 0.0
          %434 = vmatpush2.msra.mxu0 0.0
          %435 = vmatprep.mubr.f32.mxu0 0.0
          %436 = vmatmul.mubr.f32.gmra.mxu0 %v348
          %v437 = vpop.f32.mrf.mxu0
          %v438 = vadd.f32 %v309, %v437
          %v439 = vpop.f32.mrf.mxu0
          %v440 = vadd.f32 %v309, %v439
          %441 = vmatprep.mubr.f32.mxu0 0.0
          %442 = vmatmul.mubr.f32.gmra.mxu0 %v351
          %v443 = vpop.f32.mrf.mxu0
          %v444 = vadd.f32 %v314, %v443
          %v445 = vpop.f32.mrf.mxu0
          %v446 = vadd.f32 %v314, %v445
          %447 = vmatprep.mubr.f32.mxu0 0.0
          %448 = vmatmul.mubr.f32.gmra.mxu0 %v354
          %v449 = vpop.f32.mrf.mxu0
          %v450 = vadd.f32 %v319, %v449
          %v451 = vpop.f32.mrf.mxu0
          %v452 = vadd.f32 %v319, %v451
          %453 = vmatprep.mubr.f32.mxu0 0.0
          %454 = vmatmul.mubr.f32.gmra.mxu0 %v357
          %v455 = vpop.f32.mrf.mxu0
          %v456 = vadd.f32 %v324, %v455
          %v457 = vpop.f32.mrf.mxu0
          %v458 = vadd.f32 %v324, %v457
          %459 = vmatprep.mubr.f32.mxu0 0.0
          %460 = vmatmul.mubr.f32.gmra.mxu0 %v360
          %v461 = vpop.f32.mrf.mxu0
          %v462 = vadd.f32 %v329, %v461
          %v463 = vpop.f32.mrf.mxu0
          %v464 = vadd.f32 %v329, %v463
          %465 = vmatprep.mubr.f32.mxu0 0.0
          %466 = vmatmul.mubr.f32.gmra.mxu0 %v363
          %v467 = vpop.f32.mrf.mxu0
          %v468 = vadd.f32 %v334, %v467
          %v469 = vpop.f32.mrf.mxu0
          %v470 = vadd.f32 %v334, %v469
          %471 = vmatprep.mubr.f32.mxu0 0.0
          %472 = vmatmul.mubr.f32.gmra.mxu0 %v366
          %v473 = vpop.f32.mrf.mxu0
          %v474 = vadd.f32 %v339, %v473
          %v475 = vpop.f32.mrf.mxu0
          %v476 = vadd.f32 %v339, %v475
          %477 = vmatprep.mubr.f32.mxu0 0.0
          %478 = vmatmul.mubr.f32.gmra.mxu0 %v369
          %v479 = vpop.f32.mrf.mxu0
          %v480 = vadd.f32 %v344, %v479
          %v481 = vpop.f32.mrf.mxu0
          %v482 = vadd.f32 %v344, %v481
          %483 = vdwg.mxu0
          %484 = vmatprep.subr.mxu0 0.0
          %485 = vmatpush1.msra.mxu0 0.0
          %486 = vmatprep.subr.mxu0 0.0
          %487 = vmatpush1.msra.mxu0 0.0
          %488 = vmatprep.subr.mxu0 0.0
          %489 = vmatpush1.msra.mxu0 0.0
          %490 = vmatprep.subr.mxu0 0.0
          %491 = vmatpush1.msra.mxu0 0.0
          %492 = vmatprep.subr.mxu0 0.0
          %493 = vmatpush1.msra.mxu0 0.0
          %494 = vmatprep.subr.mxu0 0.0
          %495 = vmatpush1.msra.mxu0 0.0
          %496 = vmatprep.subr.mxu0 0.0
          %497 = vmatpush1.msra.mxu0 0.0
          %498 = vmatprep.subr.mxu0 0.0
          %499 = vmatpush1.msra.mxu0 0.0
          %500 = vmatprep.subr.mxu0 0.0
          %501 = vmatpush1.msra.mxu0 0.0
          %502 = vmatprep.subr.mxu0 0.0
          %503 = vmatpush1.msra.mxu0 0.0
          %504 = vmatprep.subr.mxu0 0.0
          %505 = vmatpush1.msra.mxu0 0.0
          %506 = vmatprep.subr.mxu0 0.0
          %507 = vmatpush1.msra.mxu0 0.0
          %508 = vmatprep.subr.mxu0 0.0
          %509 = vmatpush1.msra.mxu0 0.0
          %510 = vmatprep.subr.mxu0 0.0
          %511 = vmatpush1.msra.mxu0 0.0
          %512 = vmatprep.subr.mxu0 0.0
          %513 = vmatpush1.msra.mxu0 0.0
          %514 = vmatprep.subr.mxu0 %v293
          %515 = vmatpush1.msra.mxu0 %v292
          %516 = vmatprep.subr.mxu0 0.0
          %517 = vmatpush2.msra.mxu0 0.0
          %518 = vmatprep.subr.mxu0 0.0
          %519 = vmatpush2.msra.mxu0 0.0
          %520 = vmatprep.subr.mxu0 0.0
          %521 = vmatpush2.msra.mxu0 0.0
          %522 = vmatprep.subr.mxu0 0.0
          %523 = vmatpush2.msra.mxu0 0.0
          %524 = vmatprep.subr.mxu0 0.0
          %525 = vmatpush2.msra.mxu0 0.0
          %526 = vmatprep.subr.mxu0 0.0
          %527 = vmatpush2.msra.mxu0 0.0
          %528 = vmatprep.subr.mxu0 0.0
          %529 = vmatpush2.msra.mxu0 0.0
          %530 = vmatprep.subr.mxu0 0.0
          %531 = vmatpush2.msra.mxu0 0.0
          %532 = vmatprep.subr.mxu0 0.0
          %533 = vmatpush2.msra.mxu0 0.0
          %534 = vmatprep.subr.mxu0 0.0
          %535 = vmatpush2.msra.mxu0 0.0
          %536 = vmatprep.subr.mxu0 0.0
          %537 = vmatpush2.msra.mxu0 0.0
          %538 = vmatprep.subr.mxu0 0.0
          %539 = vmatpush2.msra.mxu0 0.0
          %540 = vmatprep.subr.mxu0 0.0
          %541 = vmatpush2.msra.mxu0 0.0
          %542 = vmatprep.subr.mxu0 0.0
          %543 = vmatpush2.msra.mxu0 0.0
          %544 = vmatprep.subr.mxu0 0.0
          %545 = vmatpush2.msra.mxu0 0.0
          %546 = vmatprep.subr.mxu0 0.0
          %547 = vmatpush2.msra.mxu0 0.0
          %548 = vmatprep.mubr.f32.mxu0 0.0
          %549 = vmatmul.mubr.f32.gmra.mxu0 %v348
          %v550 = vpop.f32.mrf.mxu0
          %v551 = vadd.f32 %v309, %v550
          %v552 = vpop.f32.mrf.mxu0
          %v553 = vadd.f32 %v309, %v552
          %554 = vmatprep.mubr.f32.mxu0 0.0
          %555 = vmatmul.mubr.f32.gmra.mxu0 %v351
          %v556 = vpop.f32.mrf.mxu0
          %v557 = vadd.f32 %v314, %v556
          %v558 = vpop.f32.mrf.mxu0
          %v559 = vadd.f32 %v314, %v558
          %560 = vmatprep.mubr.f32.mxu0 0.0
          %561 = vmatmul.mubr.f32.gmra.mxu0 %v354
          %v562 = vpop.f32.mrf.mxu0
          %v563 = vadd.f32 %v319, %v562
          %v564 = vpop.f32.mrf.mxu0
          %v565 = vadd.f32 %v319, %v564
          %566 = vmatprep.mubr.f32.mxu0 0.0
          %567 = vmatmul.mubr.f32.gmra.mxu0 %v357
          %v568 = vpop.f32.mrf.mxu0
          %v569 = vadd.f32 %v324, %v568
          %v570 = vpop.f32.mrf.mxu0
          %v571 = vadd.f32 %v324, %v570
          %572 = vmatprep.mubr.f32.mxu0 0.0
          %573 = vmatmul.mubr.f32.gmra.mxu0 %v360
          %v574 = vpop.f32.mrf.mxu0
          %v575 = vadd.f32 %v329, %v574
          %v576 = vpop.f32.mrf.mxu0
          %v577 = vadd.f32 %v329, %v576
          %578 = vmatprep.mubr.f32.mxu0 0.0
          %579 = vmatmul.mubr.f32.gmra.mxu0 %v363
          %v580 = vpop.f32.mrf.mxu0
          %v581 = vadd.f32 %v334, %v580
          %v582 = vpop.f32.mrf.mxu0
          %v583 = vadd.f32 %v334, %v582
          %584 = vmatprep.mubr.f32.mxu0 0.0
          %585 = vmatmul.mubr.f32.gmra.mxu0 %v366
          %v586 = vpop.f32.mrf.mxu0
          %v587 = vadd.f32 %v339, %v586
          %v588 = vpop.f32.mrf.mxu0
          %v589 = vadd.f32 %v339, %v588
          %590 = vmatprep.mubr.f32.mxu0 0.0
          %591 = vmatmul.mubr.f32.gmra.mxu0 %v369
          %v592 = vpop.f32.mrf.mxu0
          %v593 = vadd.f32 %v344, %v592
          %v594 = vpop.f32.mrf.mxu0
          %v595 = vadd.f32 %v344, %v594
          %596 = vdwg.mxu0
          %597 = vmatprep.subr.mxu0 0.0
          %598 = vmatpush1.msra.mxu0 0.0
          %599 = vmatprep.subr.mxu0 0.0
          %600 = vmatpush1.msra.mxu0 0.0
          %601 = vmatprep.subr.mxu0 0.0
          %602 = vmatpush1.msra.mxu0 0.0
          %603 = vmatprep.subr.mxu0 0.0
          %604 = vmatpush1.msra.mxu0 0.0
          %605 = vmatprep.subr.mxu0 0.0
          %606 = vmatpush1.msra.mxu0 0.0
          %607 = vmatprep.subr.mxu0 0.0
          %608 = vmatpush1.msra.mxu0 0.0
          %609 = vmatprep.subr.mxu0 0.0
          %610 = vmatpush1.msra.mxu0 0.0
          %611 = vmatprep.subr.mxu0 0.0
          %612 = vmatpush1.msra.mxu0 0.0
          %613 = vmatprep.subr.mxu0 0.0
          %614 = vmatpush1.msra.mxu0 0.0
          %615 = vmatprep.subr.mxu0 0.0
          %616 = vmatpush1.msra.mxu0 0.0
          %617 = vmatprep.subr.mxu0 0.0
          %618 = vmatpush1.msra.mxu0 0.0
          %619 = vmatprep.subr.mxu0 0.0
          %620 = vmatpush1.msra.mxu0 0.0
          %621 = vmatprep.subr.mxu0 0.0
          %622 = vmatpush1.msra.mxu0 0.0
          %623 = vmatprep.subr.mxu0 0.0
          %624 = vmatpush1.msra.mxu0 0.0
          %625 = vmatprep.subr.mxu0 0.0
          %626 = vmatpush1.msra.mxu0 0.0
          %627 = vmatprep.subr.mxu0 %v295
          %628 = vmatpush1.msra.mxu0 %v294
          %629 = vmatprep.subr.mxu0 0.0
          %630 = vmatpush2.msra.mxu0 0.0
          %631 = vmatprep.subr.mxu0 0.0
          %632 = vmatpush2.msra.mxu0 0.0
          %633 = vmatprep.subr.mxu0 0.0
          %634 = vmatpush2.msra.mxu0 0.0
          %635 = vmatprep.subr.mxu0 0.0
          %636 = vmatpush2.msra.mxu0 0.0
          %637 = vmatprep.subr.mxu0 0.0
          %638 = vmatpush2.msra.mxu0 0.0
          %639 = vmatprep.subr.mxu0 0.0
          %640 = vmatpush2.msra.mxu0 0.0
          %641 = vmatprep.subr.mxu0 0.0
          %642 = vmatpush2.msra.mxu0 0.0
          %643 = vmatprep.subr.mxu0 0.0
          %644 = vmatpush2.msra.mxu0 0.0
          %645 = vmatprep.subr.mxu0 0.0
          %646 = vmatpush2.msra.mxu0 0.0
          %647 = vmatprep.subr.mxu0 0.0
          %648 = vmatpush2.msra.mxu0 0.0
          %649 = vmatprep.subr.mxu0 0.0
          %650 = vmatpush2.msra.mxu0 0.0
          %651 = vmatprep.subr.mxu0 0.0
          %652 = vmatpush2.msra.mxu0 0.0
          %653 = vmatprep.subr.mxu0 0.0
          %654 = vmatpush2.msra.mxu0 0.0
          %655 = vmatprep.subr.mxu0 0.0
          %656 = vmatpush2.msra.mxu0 0.0
          %657 = vmatprep.subr.mxu0 0.0
          %658 = vmatpush2.msra.mxu0 0.0
          %659 = vmatprep.subr.mxu0 0.0
          %660 = vmatpush2.msra.mxu0 0.0
          %661 = vmatprep.mubr.f32.mxu0 0.0
          %662 = vmatmul.mubr.f32.gmra.mxu0 %v348
          %v663 = vpop.f32.mrf.mxu0
          %v664 = vadd.f32 %v309, %v663
          %v665 = vpop.f32.mrf.mxu0
          %v666 = vadd.f32 %v309, %v665
          %667 = vmatprep.mubr.f32.mxu0 0.0
          %668 = vmatmul.mubr.f32.gmra.mxu0 %v351
          %v669 = vpop.f32.mrf.mxu0
          %v670 = vadd.f32 %v314, %v669
          %v671 = vpop.f32.mrf.mxu0
          %v672 = vadd.f32 %v314, %v671
          %673 = vmatprep.mubr.f32.mxu0 0.0
          %674 = vmatmul.mubr.f32.gmra.mxu0 %v354
          %v675 = vpop.f32.mrf.mxu0
          %v676 = vadd.f32 %v319, %v675
          %v677 = vpop.f32.mrf.mxu0
          %v678 = vadd.f32 %v319, %v677
          %679 = vmatprep.mubr.f32.mxu0 0.0
          %680 = vmatmul.mubr.f32.gmra.mxu0 %v357
          %v681 = vpop.f32.mrf.mxu0
          %v682 = vadd.f32 %v324, %v681
          %v683 = vpop.f32.mrf.mxu0
          %v684 = vadd.f32 %v324, %v683
          %685 = vmatprep.mubr.f32.mxu0 0.0
          %686 = vmatmul.mubr.f32.gmra.mxu0 %v360
          %v687 = vpop.f32.mrf.mxu0
          %v688 = vadd.f32 %v329, %v687
          %v689 = vpop.f32.mrf.mxu0
          %v690 = vadd.f32 %v329, %v689
          %691 = vmatprep.mubr.f32.mxu0 0.0
          %692 = vmatmul.mubr.f32.gmra.mxu0 %v363
          %v693 = vpop.f32.mrf.mxu0
          %v694 = vadd.f32 %v334, %v693
          %v695 = vpop.f32.mrf.mxu0
          %v696 = vadd.f32 %v334, %v695
          %697 = vmatprep.mubr.f32.mxu0 0.0
          %698 = vmatmul.mubr.f32.gmra.mxu0 %v366
          %v699 = vpop.f32.mrf.mxu0
          %v700 = vadd.f32 %v339, %v699
          %v701 = vpop.f32.mrf.mxu0
          %v702 = vadd.f32 %v339, %v701
          %703 = vmatprep.mubr.f32.mxu0 0.0
          %704 = vmatmul.mubr.f32.gmra.mxu0 %v369
          %v705 = vpop.f32.mrf.mxu0
          %v706 = vadd.f32 %v344, %v705
          %v707 = vpop.f32.mrf.mxu0
          %v708 = vadd.f32 %v344, %v707
          %709 = vdwg.mxu0
          %710 = vmatprep.subr.mxu0 0.0
          %711 = vmatpush1.msra.mxu0 0.0
          %712 = vmatprep.subr.mxu0 0.0
          %713 = vmatpush1.msra.mxu0 0.0
          %714 = vmatprep.subr.mxu0 0.0
          %715 = vmatpush1.msra.mxu0 0.0
          %716 = vmatprep.subr.mxu0 0.0
          %717 = vmatpush1.msra.mxu0 0.0
          %718 = vmatprep.subr.mxu0 0.0
          %719 = vmatpush1.msra.mxu0 0.0
          %720 = vmatprep.subr.mxu0 0.0
          %721 = vmatpush1.msra.mxu0 0.0
          %722 = vmatprep.subr.mxu0 0.0
          %723 = vmatpush1.msra.mxu0 0.0
          %724 = vmatprep.subr.mxu0 0.0
          %725 = vmatpush1.msra.mxu0 0.0
          %726 = vmatprep.subr.mxu0 0.0
          %727 = vmatpush1.msra.mxu0 0.0
          %728 = vmatprep.subr.mxu0 0.0
          %729 = vmatpush1.msra.mxu0 0.0
          %730 = vmatprep.subr.mxu0 0.0
          %731 = vmatpush1.msra.mxu0 0.0
          %732 = vmatprep.subr.mxu0 0.0
          %733 = vmatpush1.msra.mxu0 0.0
          %734 = vmatprep.subr.mxu0 0.0
          %735 = vmatpush1.msra.mxu0 0.0
          %736 = vmatprep.subr.mxu0 0.0
          %737 = vmatpush1.msra.mxu0 0.0
          %738 = vmatprep.subr.mxu0 0.0
          %739 = vmatpush1.msra.mxu0 0.0
          %740 = vmatprep.subr.mxu0 %v297
          %741 = vmatpush1.msra.mxu0 %v296
          %742 = vmatprep.subr.mxu0 0.0
          %743 = vmatpush2.msra.mxu0 0.0
          %744 = vmatprep.subr.mxu0 0.0
          %745 = vmatpush2.msra.mxu0 0.0
          %746 = vmatprep.subr.mxu0 0.0
          %747 = vmatpush2.msra.mxu0 0.0
          %748 = vmatprep.subr.mxu0 0.0
          %749 = vmatpush2.msra.mxu0 0.0
          %750 = vmatprep.subr.mxu0 0.0
          %751 = vmatpush2.msra.mxu0 0.0
          %752 = vmatprep.subr.mxu0 0.0
          %753 = vmatpush2.msra.mxu0 0.0
          %754 = vmatprep.subr.mxu0 0.0
          %755 = vmatpush2.msra.mxu0 0.0
          %756 = vmatprep.subr.mxu0 0.0
          %757 = vmatpush2.msra.mxu0 0.0
          %758 = vmatprep.subr.mxu0 0.0
          %759 = vmatpush2.msra.mxu0 0.0
          %760 = vmatprep.subr.mxu0 0.0
          %761 = vmatpush2.msra.mxu0 0.0
          %762 = vmatprep.subr.mxu0 0.0
          %763 = vmatpush2.msra.mxu0 0.0
          %764 = vmatprep.subr.mxu0 0.0
          %765 = vmatpush2.msra.mxu0 0.0
          %766 = vmatprep.subr.mxu0 0.0
          %767 = vmatpush2.msra.mxu0 0.0
          %768 = vmatprep.subr.mxu0 0.0
          %769 = vmatpush2.msra.mxu0 0.0
          %770 = vmatprep.subr.mxu0 0.0
          %771 = vmatpush2.msra.mxu0 0.0
          %772 = vmatprep.subr.mxu0 0.0
          %773 = vmatpush2.msra.mxu0 0.0
          %774 = vmatprep.mubr.f32.mxu0 0.0
          %775 = vmatmul.mubr.f32.gmra.mxu0 %v348
          %v776 = vpop.f32.mrf.mxu0
          %v777 = vadd.f32 %v309, %v776
          %v778 = vpop.f32.mrf.mxu0
          %v779 = vadd.f32 %v309, %v778
          %780 = vmatprep.mubr.f32.mxu0 0.0
          %781 = vmatmul.mubr.f32.gmra.mxu0 %v351
          %v782 = vpop.f32.mrf.mxu0
          %v783 = vadd.f32 %v314, %v782
          %v784 = vpop.f32.mrf.mxu0
          %v785 = vadd.f32 %v314, %v784
          %786 = vmatprep.mubr.f32.mxu0 0.0
          %787 = vmatmul.mubr.f32.gmra.mxu0 %v354
          %v788 = vpop.f32.mrf.mxu0
          %v789 = vadd.f32 %v319, %v788
          %v790 = vpop.f32.mrf.mxu0
          %v791 = vadd.f32 %v319, %v790
          %792 = vmatprep.mubr.f32.mxu0 0.0
          %793 = vmatmul.mubr.f32.gmra.mxu0 %v357
          %v794 = vpop.f32.mrf.mxu0
          %v795 = vadd.f32 %v324, %v794
          %v796 = vpop.f32.mrf.mxu0
          %v797 = vadd.f32 %v324, %v796
          %798 = vmatprep.mubr.f32.mxu0 0.0
          %799 = vmatmul.mubr.f32.gmra.mxu0 %v360
          %v800 = vpop.f32.mrf.mxu0
          %v801 = vadd.f32 %v329, %v800
          %v802 = vpop.f32.mrf.mxu0
          %v803 = vadd.f32 %v329, %v802
          %804 = vmatprep.mubr.f32.mxu0 0.0
          %805 = vmatmul.mubr.f32.gmra.mxu0 %v363
          %v806 = vpop.f32.mrf.mxu0
          %v807 = vadd.f32 %v334, %v806
          %v808 = vpop.f32.mrf.mxu0
          %v809 = vadd.f32 %v334, %v808
          %810 = vmatprep.mubr.f32.mxu0 0.0
          %811 = vmatmul.mubr.f32.gmra.mxu0 %v366
          %v812 = vpop.f32.mrf.mxu0
          %v813 = vadd.f32 %v339, %v812
          %v814 = vpop.f32.mrf.mxu0
          %v815 = vadd.f32 %v339, %v814
          %816 = vmatprep.mubr.f32.mxu0 0.0
          %817 = vmatmul.mubr.f32.gmra.mxu0 %v369
          %v818 = vpop.f32.mrf.mxu0
          %v819 = vadd.f32 %v344, %v818
          %v820 = vpop.f32.mrf.mxu0
          %v821 = vadd.f32 %v344, %v820
          %822 = vdwg.mxu0
          %823 = vmatprep.subr.mxu0 0.0
          %824 = vmatpush1.msra.mxu0 0.0
          %825 = vmatprep.subr.mxu0 0.0
          %826 = vmatpush1.msra.mxu0 0.0
          %827 = vmatprep.subr.mxu0 0.0
          %828 = vmatpush1.msra.mxu0 0.0
          %829 = vmatprep.subr.mxu0 0.0
          %830 = vmatpush1.msra.mxu0 0.0
          %831 = vmatprep.subr.mxu0 0.0
          %832 = vmatpush1.msra.mxu0 0.0
          %833 = vmatprep.subr.mxu0 0.0
          %834 = vmatpush1.msra.mxu0 0.0
          %835 = vmatprep.subr.mxu0 0.0
          %836 = vmatpush1.msra.mxu0 0.0
          %837 = vmatprep.subr.mxu0 0.0
          %838 = vmatpush1.msra.mxu0 0.0
          %839 = vmatprep.subr.mxu0 0.0
          %840 = vmatpush1.msra.mxu0 0.0
          %841 = vmatprep.subr.mxu0 0.0
          %842 = vmatpush1.msra.mxu0 0.0
          %843 = vmatprep.subr.mxu0 0.0
          %844 = vmatpush1.msra.mxu0 0.0
          %845 = vmatprep.subr.mxu0 0.0
          %846 = vmatpush1.msra.mxu0 0.0
          %847 = vmatprep.subr.mxu0 0.0
          %848 = vmatpush1.msra.mxu0 0.0
          %849 = vmatprep.subr.mxu0 0.0
          %850 = vmatpush1.msra.mxu0 0.0
          %851 = vmatprep.subr.mxu0 0.0
          %852 = vmatpush1.msra.mxu0 0.0
          %853 = vmatprep.subr.mxu0 %v299
          %854 = vmatpush1.msra.mxu0 %v298
          %855 = vmatprep.subr.mxu0 0.0
          %856 = vmatpush2.msra.mxu0 0.0
          %857 = vmatprep.subr.mxu0 0.0
          %858 = vmatpush2.msra.mxu0 0.0
          %859 = vmatprep.subr.mxu0 0.0
          %860 = vmatpush2.msra.mxu0 0.0
          %861 = vmatprep.subr.mxu0 0.0
          %862 = vmatpush2.msra.mxu0 0.0
          %863 = vmatprep.subr.mxu0 0.0
          %864 = vmatpush2.msra.mxu0 0.0
          %865 = vmatprep.subr.mxu0 0.0
          %866 = vmatpush2.msra.mxu0 0.0
          %867 = vmatprep.subr.mxu0 0.0
          %868 = vmatpush2.msra.mxu0 0.0
          %869 = vmatprep.subr.mxu0 0.0
          %870 = vmatpush2.msra.mxu0 0.0
          %871 = vmatprep.subr.mxu0 0.0
          %872 = vmatpush2.msra.mxu0 0.0
          %873 = vmatprep.subr.mxu0 0.0
          %874 = vmatpush2.msra.mxu0 0.0
          %875 = vmatprep.subr.mxu0 0.0
          %876 = vmatpush2.msra.mxu0 0.0
          %877 = vmatprep.subr.mxu0 0.0
          %878 = vmatpush2.msra.mxu0 0.0
          %879 = vmatprep.subr.mxu0 0.0
          %880 = vmatpush2.msra.mxu0 0.0
          %881 = vmatprep.subr.mxu0 0.0
          %882 = vmatpush2.msra.mxu0 0.0
          %883 = vmatprep.subr.mxu0 0.0
          %884 = vmatpush2.msra.mxu0 0.0
          %885 = vmatprep.subr.mxu0 0.0
          %886 = vmatpush2.msra.mxu0 0.0
          %887 = vmatprep.mubr.f32.mxu0 0.0
          %888 = vmatmul.mubr.f32.gmra.mxu0 %v348
          %v889 = vpop.f32.mrf.mxu0
          %v890 = vadd.f32 %v309, %v889
          %v891 = vpop.f32.mrf.mxu0
          %v892 = vadd.f32 %v309, %v891
          %893 = vmatprep.mubr.f32.mxu0 0.0
          %894 = vmatmul.mubr.f32.gmra.mxu0 %v351
          %v895 = vpop.f32.mrf.mxu0
          %v896 = vadd.f32 %v314, %v895
          %v897 = vpop.f32.mrf.mxu0
          %v898 = vadd.f32 %v314, %v897
          %899 = vmatprep.mubr.f32.mxu0 0.0
          %900 = vmatmul.mubr.f32.gmra.mxu0 %v354
          %v901 = vpop.f32.mrf.mxu0
          %v902 = vadd.f32 %v319, %v901
          %v903 = vpop.f32.mrf.mxu0
          %v904 = vadd.f32 %v319, %v903
          %905 = vmatprep.mubr.f32.mxu0 0.0
          %906 = vmatmul.mubr.f32.gmra.mxu0 %v357
          %v907 = vpop.f32.mrf.mxu0
          %v908 = vadd.f32 %v324, %v907
          %v909 = vpop.f32.mrf.mxu0
          %v910 = vadd.f32 %v324, %v909
          %911 = vmatprep.mubr.f32.mxu0 0.0
          %912 = vmatmul.mubr.f32.gmra.mxu0 %v360
          %v913 = vpop.f32.mrf.mxu0
          %v914 = vadd.f32 %v329, %v913
          %v915 = vpop.f32.mrf.mxu0
          %v916 = vadd.f32 %v329, %v915
          %917 = vmatprep.mubr.f32.mxu0 0.0
          %918 = vmatmul.mubr.f32.gmra.mxu0 %v363
          %v919 = vpop.f32.mrf.mxu0
          %v920 = vadd.f32 %v334, %v919
          %v921 = vpop.f32.mrf.mxu0
          %v922 = vadd.f32 %v334, %v921
          %923 = vmatprep.mubr.f32.mxu0 0.0
          %924 = vmatmul.mubr.f32.gmra.mxu0 %v366
          %v925 = vpop.f32.mrf.mxu0
          %v926 = vadd.f32 %v339, %v925
          %v927 = vpop.f32.mrf.mxu0
          %v928 = vadd.f32 %v339, %v927
          %929 = vmatprep.mubr.f32.mxu0 0.0
          %930 = vmatmul.mubr.f32.gmra.mxu0 %v369
          %v931 = vpop.f32.mrf.mxu0
          %v932 = vadd.f32 %v344, %v931
          %v933 = vpop.f32.mrf.mxu0
          %v934 = vadd.f32 %v344, %v933
          %935 = vdwg.mxu0
          %936 = vmatprep.subr.mxu0 0.0
          %937 = vmatpush1.msra.mxu0 0.0
          %938 = vmatprep.subr.mxu0 0.0
          %939 = vmatpush1.msra.mxu0 0.0
          %940 = vmatprep.subr.mxu0 0.0
          %941 = vmatpush1.msra.mxu0 0.0
          %942 = vmatprep.subr.mxu0 0.0
          %943 = vmatpush1.msra.mxu0 0.0
          %944 = vmatprep.subr.mxu0 0.0
          %945 = vmatpush1.msra.mxu0 0.0
          %946 = vmatprep.subr.mxu0 0.0
          %947 = vmatpush1.msra.mxu0 0.0
          %948 = vmatprep.subr.mxu0 0.0
          %949 = vmatpush1.msra.mxu0 0.0
          %950 = vmatprep.subr.mxu0 0.0
          %951 = vmatpush1.msra.mxu0 0.0
          %952 = vmatprep.subr.mxu0 0.0
          %953 = vmatpush1.msra.mxu0 0.0
          %954 = vmatprep.subr.mxu0 0.0
          %955 = vmatpush1.msra.mxu0 0.0
          %956 = vmatprep.subr.mxu0 0.0
          %957 = vmatpush1.msra.mxu0 0.0
          %958 = vmatprep.subr.mxu0 0.0
          %959 = vmatpush1.msra.mxu0 0.0
          %960 = vmatprep.subr.mxu0 0.0
          %961 = vmatpush1.msra.mxu0 0.0
          %962 = vmatprep.subr.mxu0 0.0
          %963 = vmatpush1.msra.mxu0 0.0
          %964 = vmatprep.subr.mxu0 0.0
          %965 = vmatpush1.msra.mxu0 0.0
          %966 = vmatprep.subr.mxu0 %v301
          %967 = vmatpush1.msra.mxu0 %v300
          %968 = vmatprep.subr.mxu0 0.0
          %969 = vmatpush2.msra.mxu0 0.0
          %970 = vmatprep.subr.mxu0 0.0
          %971 = vmatpush2.msra.mxu0 0.0
          %972 = vmatprep.subr.mxu0 0.0
          %973 = vmatpush2.msra.mxu0 0.0
          %974 = vmatprep.subr.mxu0 0.0
          %975 = vmatpush2.msra.mxu0 0.0
          %976 = vmatprep.subr.mxu0 0.0
          %977 = vmatpush2.msra.mxu0 0.0
          %978 = vmatprep.subr.mxu0 0.0
          %979 = vmatpush2.msra.mxu0 0.0
          %980 = vmatprep.subr.mxu0 0.0
          %981 = vmatpush2.msra.mxu0 0.0
          %982 = vmatprep.subr.mxu0 0.0
          %983 = vmatpush2.msra.mxu0 0.0
          %984 = vmatprep.subr.mxu0 0.0
          %985 = vmatpush2.msra.mxu0 0.0
          %986 = vmatprep.subr.mxu0 0.0
          %987 = vmatpush2.msra.mxu0 0.0
          %988 = vmatprep.subr.mxu0 0.0
          %989 = vmatpush2.msra.mxu0 0.0
          %990 = vmatprep.subr.mxu0 0.0
          %991 = vmatpush2.msra.mxu0 0.0
          %992 = vmatprep.subr.mxu0 0.0
          %993 = vmatpush2.msra.mxu0 0.0
          %994 = vmatprep.subr.mxu0 0.0
          %995 = vmatpush2.msra.mxu0 0.0
          %996 = vmatprep.subr.mxu0 0.0
          %997 = vmatpush2.msra.mxu0 0.0
          %998 = vmatprep.subr.mxu0 0.0
          %999 = vmatpush2.msra.mxu0 0.0
          %1000 = vmatprep.mubr.f32.mxu0 0.0
          %1001 = vmatmul.mubr.f32.gmra.mxu0 %v348
          %v1002 = vpop.f32.mrf.mxu0
          %v1003 = vadd.f32 %v309, %v1002
          %v1004 = vpop.f32.mrf.mxu0
          %v1005 = vadd.f32 %v309, %v1004
          %1006 = vmatprep.mubr.f32.mxu0 0.0
          %1007 = vmatmul.mubr.f32.gmra.mxu0 %v351
          %v1008 = vpop.f32.mrf.mxu0
          %v1009 = vadd.f32 %v314, %v1008
          %v1010 = vpop.f32.mrf.mxu0
          %v1011 = vadd.f32 %v314, %v1010
          %1012 = vmatprep.mubr.f32.mxu0 0.0
          %1013 = vmatmul.mubr.f32.gmra.mxu0 %v354
          %v1014 = vpop.f32.mrf.mxu0
          %v1015 = vadd.f32 %v319, %v1014
          %v1016 = vpop.f32.mrf.mxu0
          %v1017 = vadd.f32 %v319, %v1016
          %1018 = vmatprep.mubr.f32.mxu0 0.0
          %1019 = vmatmul.mubr.f32.gmra.mxu0 %v357
          %v1020 = vpop.f32.mrf.mxu0
          %v1021 = vadd.f32 %v324, %v1020
          %v1022 = vpop.f32.mrf.mxu0
          %v1023 = vadd.f32 %v324, %v1022
          %1024 = vmatprep.mubr.f32.mxu0 0.0
          %1025 = vmatmul.mubr.f32.gmra.mxu0 %v360
          %v1026 = vpop.f32.mrf.mxu0
          %v1027 = vadd.f32 %v329, %v1026
          %v1028 = vpop.f32.mrf.mxu0
          %v1029 = vadd.f32 %v329, %v1028
          %1030 = vmatprep.mubr.f32.mxu0 0.0
          %1031 = vmatmul.mubr.f32.gmra.mxu0 %v363
          %v1032 = vpop.f32.mrf.mxu0
          %v1033 = vadd.f32 %v334, %v1032
          %v1034 = vpop.f32.mrf.mxu0
          %v1035 = vadd.f32 %v334, %v1034
          %1036 = vmatprep.mubr.f32.mxu0 0.0
          %1037 = vmatmul.mubr.f32.gmra.mxu0 %v366
          %v1038 = vpop.f32.mrf.mxu0
          %v1039 = vadd.f32 %v339, %v1038
          %v1040 = vpop.f32.mrf.mxu0
          %v1041 = vadd.f32 %v339, %v1040
          %1042 = vmatprep.mubr.f32.mxu0 0.0
          %1043 = vmatmul.mubr.f32.gmra.mxu0 %v369
          %v1044 = vpop.f32.mrf.mxu0
          %v1045 = vadd.f32 %v344, %v1044
          %v1046 = vpop.f32.mrf.mxu0
          %v1047 = vadd.f32 %v344, %v1046
          %1048 = vdwg.mxu0
          %1049 = vmatprep.subr.mxu0 0.0
          %1050 = vmatpush1.msra.mxu0 0.0
          %1051 = vmatprep.subr.mxu0 0.0
          %1052 = vmatpush1.msra.mxu0 0.0
          %1053 = vmatprep.subr.mxu0 0.0
          %1054 = vmatpush1.msra.mxu0 0.0
          %1055 = vmatprep.subr.mxu0 0.0
          %1056 = vmatpush1.msra.mxu0 0.0
          %1057 = vmatprep.subr.mxu0 0.0
          %1058 = vmatpush1.msra.mxu0 0.0
          %1059 = vmatprep.subr.mxu0 0.0
          %1060 = vmatpush1.msra.mxu0 0.0
          %1061 = vmatprep.subr.mxu0 0.0
          %1062 = vmatpush1.msra.mxu0 0.0
          %1063 = vmatprep.subr.mxu0 0.0
          %1064 = vmatpush1.msra.mxu0 0.0
          %1065 = vmatprep.subr.mxu0 0.0
          %1066 = vmatpush1.msra.mxu0 0.0
          %1067 = vmatprep.subr.mxu0 0.0
          %1068 = vmatpush1.msra.mxu0 0.0
          %1069 = vmatprep.subr.mxu0 0.0
          %1070 = vmatpush1.msra.mxu0 0.0
          %1071 = vmatprep.subr.mxu0 0.0
          %1072 = vmatpush1.msra.mxu0 0.0
          %1073 = vmatprep.subr.mxu0 0.0
          %1074 = vmatpush1.msra.mxu0 0.0
          %1075 = vmatprep.subr.mxu0 0.0
          %1076 = vmatpush1.msra.mxu0 0.0
          %1077 = vmatprep.subr.mxu0 0.0
          %1078 = vmatpush1.msra.mxu0 0.0
          %1079 = vmatprep.subr.mxu0 %v303
          %1080 = vmatpush1.msra.mxu0 %v302
          %1081 = vmatprep.subr.mxu0 0.0
          %1082 = vmatpush2.msra.mxu0 0.0
          %1083 = vmatprep.subr.mxu0 0.0
          %1084 = vmatpush2.msra.mxu0 0.0
          %1085 = vmatprep.subr.mxu0 0.0
          %1086 = vmatpush2.msra.mxu0 0.0
          %1087 = vmatprep.subr.mxu0 0.0
          %1088 = vmatpush2.msra.mxu0 0.0
          %1089 = vmatprep.subr.mxu0 0.0
          %1090 = vmatpush2.msra.mxu0 0.0
          %1091 = vmatprep.subr.mxu0 0.0
          %1092 = vmatpush2.msra.mxu0 0.0
          %1093 = vmatprep.subr.mxu0 0.0
          %1094 = vmatpush2.msra.mxu0 0.0
          %1095 = vmatprep.subr.mxu0 0.0
          %1096 = vmatpush2.msra.mxu0 0.0
          %1097 = vmatprep.subr.mxu0 0.0
          %1098 = vmatpush2.msra.mxu0 0.0
          %1099 = vmatprep.subr.mxu0 0.0
          %1100 = vmatpush2.msra.mxu0 0.0
          %1101 = vmatprep.subr.mxu0 0.0
          %1102 = vmatpush2.msra.mxu0 0.0
          %1103 = vmatprep.subr.mxu0 0.0
          %1104 = vmatpush2.msra.mxu0 0.0
          %1105 = vmatprep.subr.mxu0 0.0
          %1106 = vmatpush2.msra.mxu0 0.0
          %1107 = vmatprep.subr.mxu0 0.0
          %1108 = vmatpush2.msra.mxu0 0.0
          %1109 = vmatprep.subr.mxu0 0.0
          %1110 = vmatpush2.msra.mxu0 0.0
          %1111 = vmatprep.subr.mxu0 0.0
          %1112 = vmatpush2.msra.mxu0 0.0
          %1113 = vmatprep.mubr.f32.mxu0 0.0
          %1114 = vmatmul.mubr.f32.gmra.mxu0 %v348
          %v1115 = vpop.f32.mrf.mxu0
          %v1116 = vadd.f32 %v309, %v1115
          %v1117 = vpop.f32.mrf.mxu0
          %v1118 = vadd.f32 %v309, %v1117
          %1119 = vmatprep.mubr.f32.mxu0 0.0
          %1120 = vmatmul.mubr.f32.gmra.mxu0 %v351
          %v1121 = vpop.f32.mrf.mxu0
          %v1122 = vadd.f32 %v314, %v1121
          %v1123 = vpop.f32.mrf.mxu0
          %v1124 = vadd.f32 %v314, %v1123
          %1125 = vmatprep.mubr.f32.mxu0 0.0
          %1126 = vmatmul.mubr.f32.gmra.mxu0 %v354
          %v1127 = vpop.f32.mrf.mxu0
          %v1128 = vadd.f32 %v319, %v1127
          %v1129 = vpop.f32.mrf.mxu0
          %v1130 = vadd.f32 %v319, %v1129
          %1131 = vmatprep.mubr.f32.mxu0 0.0
          %1132 = vmatmul.mubr.f32.gmra.mxu0 %v357
          %v1133 = vpop.f32.mrf.mxu0
          %v1134 = vadd.f32 %v324, %v1133
          %v1135 = vpop.f32.mrf.mxu0
          %v1136 = vadd.f32 %v324, %v1135
          %1137 = vmatprep.mubr.f32.mxu0 0.0
          %1138 = vmatmul.mubr.f32.gmra.mxu0 %v360
          %v1139 = vpop.f32.mrf.mxu0
          %v1140 = vadd.f32 %v329, %v1139
          %v1141 = vpop.f32.mrf.mxu0
          %v1142 = vadd.f32 %v329, %v1141
          %1143 = vmatprep.mubr.f32.mxu0 0.0
          %1144 = vmatmul.mubr.f32.gmra.mxu0 %v363
          %v1145 = vpop.f32.mrf.mxu0
          %v1146 = vadd.f32 %v334, %v1145
          %v1147 = vpop.f32.mrf.mxu0
          %v1148 = vadd.f32 %v334, %v1147
          %1149 = vmatprep.mubr.f32.mxu0 0.0
          %1150 = vmatmul.mubr.f32.gmra.mxu0 %v366
          %v1151 = vpop.f32.mrf.mxu0
          %v1152 = vadd.f32 %v339, %v1151
          %v1153 = vpop.f32.mrf.mxu0
          %v1154 = vadd.f32 %v339, %v1153
          %1155 = vmatprep.mubr.f32.mxu0 0.0
          %1156 = vmatmul.mubr.f32.gmra.mxu0 %v369
          %v1157 = vpop.f32.mrf.mxu0
          %v1158 = vadd.f32 %v344, %v1157
          %v1159 = vpop.f32.mrf.mxu0
          %v1160 = vadd.f32 %v344, %v1159
          %1161 = vdwg.mxu0
          %1162 = vmatprep.subr.mxu0 0.0
          %1163 = vmatpush1.msra.mxu0 0.0
          %1164 = vmatprep.subr.mxu0 0.0
          %1165 = vmatpush1.msra.mxu0 0.0
          %1166 = vmatprep.subr.mxu0 0.0
          %1167 = vmatpush1.msra.mxu0 0.0
          %1168 = vmatprep.subr.mxu0 0.0
          %1169 = vmatpush1.msra.mxu0 0.0
          %1170 = vmatprep.subr.mxu0 0.0
          %1171 = vmatpush1.msra.mxu0 0.0
          %1172 = vmatprep.subr.mxu0 0.0
          %1173 = vmatpush1.msra.mxu0 0.0
          %1174 = vmatprep.subr.mxu0 0.0
          %1175 = vmatpush1.msra.mxu0 0.0
          %1176 = vmatprep.subr.mxu0 0.0
          %1177 = vmatpush1.msra.mxu0 0.0
          %1178 = vmatprep.subr.mxu0 0.0
          %1179 = vmatpush1.msra.mxu0 0.0
          %1180 = vmatprep.subr.mxu0 0.0
          %1181 = vmatpush1.msra.mxu0 0.0
          %1182 = vmatprep.subr.mxu0 0.0
          %1183 = vmatpush1.msra.mxu0 0.0
          %1184 = vmatprep.subr.mxu0 0.0
          %1185 = vmatpush1.msra.mxu0 0.0
          %1186 = vmatprep.subr.mxu0 0.0
          %1187 = vmatpush1.msra.mxu0 0.0
          %1188 = vmatprep.subr.mxu0 0.0
          %1189 = vmatpush1.msra.mxu0 0.0
          %1190 = vmatprep.subr.mxu0 0.0
          %1191 = vmatpush1.msra.mxu0 0.0
          %1192 = vmatprep.subr.mxu0 %v305
          %1193 = vmatpush1.msra.mxu0 %v304
          %1194 = vmatprep.subr.mxu0 0.0
          %1195 = vmatpush2.msra.mxu0 0.0
          %1196 = vmatprep.subr.mxu0 0.0
          %1197 = vmatpush2.msra.mxu0 0.0
          %1198 = vmatprep.subr.mxu0 0.0
          %1199 = vmatpush2.msra.mxu0 0.0
          %1200 = vmatprep.subr.mxu0 0.0
          %1201 = vmatpush2.msra.mxu0 0.0
          %1202 = vmatprep.subr.mxu0 0.0
          %1203 = vmatpush2.msra.mxu0 0.0
          %1204 = vmatprep.subr.mxu0 0.0
          %1205 = vmatpush2.msra.mxu0 0.0
          %1206 = vmatprep.subr.mxu0 0.0
          %1207 = vmatpush2.msra.mxu0 0.0
          %1208 = vmatprep.subr.mxu0 0.0
          %1209 = vmatpush2.msra.mxu0 0.0
          %1210 = vmatprep.subr.mxu0 0.0
          %1211 = vmatpush2.msra.mxu0 0.0
          %1212 = vmatprep.subr.mxu0 0.0
          %1213 = vmatpush2.msra.mxu0 0.0
          %1214 = vmatprep.subr.mxu0 0.0
          %1215 = vmatpush2.msra.mxu0 0.0
          %1216 = vmatprep.subr.mxu0 0.0
          %1217 = vmatpush2.msra.mxu0 0.0
          %1218 = vmatprep.subr.mxu0 0.0
          %1219 = vmatpush2.msra.mxu0 0.0
          %1220 = vmatprep.subr.mxu0 0.0
          %1221 = vmatpush2.msra.mxu0 0.0
          %1222 = vmatprep.subr.mxu0 0.0
          %1223 = vmatpush2.msra.mxu0 0.0
          %1224 = vmatprep.subr.mxu0 0.0
          %1225 = vmatpush2.msra.mxu0 0.0
          %1226 = vmatprep.mubr.f32.mxu0 0.0
          %1227 = vmatmul.mubr.f32.gmra.mxu0 %v348
          %v1228 = vpop.f32.mrf.mxu0
          %v1229 = vadd.f32 %v309, %v1228
          %v1230 = vpop.f32.mrf.mxu0
          %v1231 = vadd.f32 %v309, %v1230
          %1232 = vmatprep.mubr.f32.mxu0 0.0
          %1233 = vmatmul.mubr.f32.gmra.mxu0 %v351
          %v1234 = vpop.f32.mrf.mxu0
          %v1235 = vadd.f32 %v314, %v1234
          %v1236 = vpop.f32.mrf.mxu0
          %v1237 = vadd.f32 %v314, %v1236
          %1238 = vmatprep.mubr.f32.mxu0 0.0
          %1239 = vmatmul.mubr.f32.gmra.mxu0 %v354
          %v1240 = vpop.f32.mrf.mxu0
          %v1241 = vadd.f32 %v319, %v1240
          %v1242 = vpop.f32.mrf.mxu0
          %v1243 = vadd.f32 %v319, %v1242
          %1244 = vmatprep.mubr.f32.mxu0 0.0
          %1245 = vmatmul.mubr.f32.gmra.mxu0 %v357
          %v1246 = vpop.f32.mrf.mxu0
          %v1247 = vadd.f32 %v324, %v1246
          %v1248 = vpop.f32.mrf.mxu0
          %v1249 = vadd.f32 %v324, %v1248
          %1250 = vmatprep.mubr.f32.mxu0 0.0
          %1251 = vmatmul.mubr.f32.gmra.mxu0 %v360
          %v1252 = vpop.f32.mrf.mxu0
          %v1253 = vadd.f32 %v329, %v1252
          %v1254 = vpop.f32.mrf.mxu0
          %v1255 = vadd.f32 %v329, %v1254
          %1256 = vmatprep.mubr.f32.mxu0 0.0
          %1257 = vmatmul.mubr.f32.gmra.mxu0 %v363
          %v1258 = vpop.f32.mrf.mxu0
          %v1259 = vadd.f32 %v334, %v1258
          %v1260 = vpop.f32.mrf.mxu0
          %v1261 = vadd.f32 %v334, %v1260
          %1262 = vmatprep.mubr.f32.mxu0 0.0
          %1263 = vmatmul.mubr.f32.gmra.mxu0 %v366
          %v1264 = vpop.f32.mrf.mxu0
          %v1265 = vadd.f32 %v339, %v1264
          %v1266 = vpop.f32.mrf.mxu0
          %v1267 = vadd.f32 %v339, %v1266
          %1268 = vmatprep.mubr.f32.mxu0 0.0
          %1269 = vmatmul.mubr.f32.gmra.mxu0 %v369
          %v1270 = vpop.f32.mrf.mxu0
          %v1271 = vadd.f32 %v344, %v1270
          %v1272 = vpop.f32.mrf.mxu0
          %v1273 = vadd.f32 %v344, %v1272
          %1274 = vdwg.mxu0
          %v1275 = vmax.f32 %v438, 0.0
          %v1276 = vmax.f32 %v440, 0.0
          %v1277 = vmax.f32 %v551, 0.0
          %v1278 = vmax.f32 %v553, 0.0
          %v1279 = vmax.f32 %v664, 0.0
          %v1280 = vmax.f32 %v666, 0.0
          %v1281 = vmax.f32 %v777, 0.0
          %v1282 = vmax.f32 %v779, 0.0
          %v1283 = vmax.f32 %v890, 0.0
          %v1284 = vmax.f32 %v892, 0.0
          %v1285 = vmax.f32 %v1003, 0.0
          %v1286 = vmax.f32 %v1005, 0.0
          %v1287 = vmax.f32 %v1116, 0.0
          %v1288 = vmax.f32 %v1118, 0.0
          %v1289 = vmax.f32 %v1229, 0.0
          %v1290 = vmax.f32 %v1231, 0.0
          %v1291 = vmax.f32 %v444, 0.0
          %v1292 = vmax.f32 %v446, 0.0
          %v1293 = vmax.f32 %v557, 0.0
          %v1294 = vmax.f32 %v559, 0.0
          %v1295 = vmax.f32 %v670, 0.0
          %v1296 = vmax.f32 %v672, 0.0
          %v1297 = vmax.f32 %v783, 0.0
          %v1298 = vmax.f32 %v785, 0.0
          %v1299 = vmax.f32 %v896, 0.0
          %v1300 = vmax.f32 %v898, 0.0
          %v1301 = vmax.f32 %v1009, 0.0
          %v1302 = vmax.f32 %v1011, 0.0
          %v1303 = vmax.f32 %v1122, 0.0
          %v1304 = vmax.f32 %v1124, 0.0
          %v1305 = vmax.f32 %v1235, 0.0
          %v1306 = vmax.f32 %v1237, 0.0
          %v1307 = vmax.f32 %v450, 0.0
          %v1308 = vmax.f32 %v452, 0.0
          %v1309 = vmax.f32 %v563, 0.0
          %v1310 = vmax.f32 %v565, 0.0
          %v1311 = vmax.f32 %v676, 0.0
          %v1312 = vmax.f32 %v678, 0.0
          %v1313 = vmax.f32 %v789, 0.0
          %v1314 = vmax.f32 %v791, 0.0
          %v1315 = vmax.f32 %v902, 0.0
          %v1316 = vmax.f32 %v904, 0.0
          %v1317 = vmax.f32 %v1015, 0.0
          %v1318 = vmax.f32 %v1017, 0.0
          %v1319 = vmax.f32 %v1128, 0.0
          %v1320 = vmax.f32 %v1130, 0.0
          %v1321 = vmax.f32 %v1241, 0.0
          %v1322 = vmax.f32 %v1243, 0.0
          %v1323 = vmax.f32 %v456, 0.0
          %v1324 = vmax.f32 %v458, 0.0
          %v1325 = vmax.f32 %v569, 0.0
          %v1326 = vmax.f32 %v571, 0.0
          %v1327 = vmax.f32 %v682, 0.0
          %v1328 = vmax.f32 %v684, 0.0
          %v1329 = vmax.f32 %v795, 0.0
          %v1330 = vmax.f32 %v797, 0.0
          %v1331 = vmax.f32 %v908, 0.0
          %v1332 = vmax.f32 %v910, 0.0
          %v1333 = vmax.f32 %v1021, 0.0
          %v1334 = vmax.f32 %v1023, 0.0
          %v1335 = vmax.f32 %v1134, 0.0
          %v1336 = vmax.f32 %v1136, 0.0
          %v1337 = vmax.f32 %v1247, 0.0
          %v1338 = vmax.f32 %v1249, 0.0
          %v1339 = vmax.f32 %v462, 0.0
          %v1340 = vmax.f32 %v464, 0.0
          %v1341 = vmax.f32 %v575, 0.0
          %v1342 = vmax.f32 %v577, 0.0
          %v1343 = vmax.f32 %v688, 0.0
          %v1344 = vmax.f32 %v690, 0.0
          %v1345 = vmax.f32 %v801, 0.0
          %v1346 = vmax.f32 %v803, 0.0
          %v1347 = vmax.f32 %v914, 0.0
          %v1348 = vmax.f32 %v916, 0.0
          %v1349 = vmax.f32 %v1027, 0.0
          %v1350 = vmax.f32 %v1029, 0.0
          %v1351 = vmax.f32 %v1140, 0.0
          %v1352 = vmax.f32 %v1142, 0.0
          %v1353 = vmax.f32 %v1253, 0.0
          %v1354 = vmax.f32 %v1255, 0.0
          %v1355 = vmax.f32 %v468, 0.0
          %v1356 = vmax.f32 %v470, 0.0
          %v1357 = vmax.f32 %v581, 0.0
          %v1358 = vmax.f32 %v583, 0.0
          %v1359 = vmax.f32 %v694, 0.0
          %v1360 = vmax.f32 %v696, 0.0
          %v1361 = vmax.f32 %v807, 0.0
          %v1362 = vmax.f32 %v809, 0.0
          %v1363 = vmax.f32 %v920, 0.0
          %v1364 = vmax.f32 %v922, 0.0
          %v1365 = vmax.f32 %v1033, 0.0
          %v1366 = vmax.f32 %v1035, 0.0
          %v1367 = vmax.f32 %v1146, 0.0
          %v1368 = vmax.f32 %v1148, 0.0
          %v1369 = vmax.f32 %v1259, 0.0
          %v1370 = vmax.f32 %v1261, 0.0
          %v1371 = vmax.f32 %v474, 0.0
          %v1372 = vmax.f32 %v476, 0.0
          %v1373 = vmax.f32 %v587, 0.0
          %v1374 = vmax.f32 %v589, 0.0
          %v1375 = vmax.f32 %v700, 0.0
          %v1376 = vmax.f32 %v702, 0.0
          %v1377 = vmax.f32 %v813, 0.0
          %v1378 = vmax.f32 %v815, 0.0
          %v1379 = vmax.f32 %v926, 0.0
          %v1380 = vmax.f32 %v928, 0.0
          %v1381 = vmax.f32 %v1039, 0.0
          %v1382 = vmax.f32 %v1041, 0.0
          %v1383 = vmax.f32 %v1152, 0.0
          %v1384 = vmax.f32 %v1154, 0.0
          %v1385 = vmax.f32 %v1265, 0.0
          %v1386 = vmax.f32 %v1267, 0.0
          %v1387 = vmax.f32 %v480, 0.0
          %v1388 = vmax.f32 %v482, 0.0
          %v1389 = vmax.f32 %v593, 0.0
          %v1390 = vmax.f32 %v595, 0.0
          %v1391 = vmax.f32 %v706, 0.0
          %v1392 = vmax.f32 %v708, 0.0
          %v1393 = vmax.f32 %v819, 0.0
          %v1394 = vmax.f32 %v821, 0.0
          %v1395 = vmax.f32 %v932, 0.0
          %v1396 = vmax.f32 %v934, 0.0
          %v1397 = vmax.f32 %v1045, 0.0
          %v1398 = vmax.f32 %v1047, 0.0
          %v1399 = vmax.f32 %v1158, 0.0
          %v1400 = vmax.f32 %v1160, 0.0
          %v1401 = vmax.f32 %v1271, 0.0
          %v1402 = vmax.f32 %v1273, 0.0
          %1404 = vset.pattern.permute.xlu0 0
          %1405 = vperm.xlu0 %1404, %v278
          %v1406 = vpop.permute.xlu0 %1405
          %vm1408 = vcmask 523264
          %v1410 = vsel %vm1408, %v269, 0
          %1412 = vmatprep.subr.mxu0 0.0
          %1413 = vmatpush1.msra.mxu0 0.0
          %1414 = vmatprep.subr.mxu0 0.0
          %1415 = vmatpush1.msra.mxu0 0.0
          %1416 = vmatprep.subr.mxu0 0.0
          %1417 = vmatpush1.msra.mxu0 0.0
          %1418 = vmatprep.subr.mxu0 0.0
          %1419 = vmatpush1.msra.mxu0 0.0
          %1420 = vmatprep.subr.mxu0 0.0
          %1421 = vmatpush1.msra.mxu0 0.0
          %1422 = vmatprep.subr.mxu0 0.0
          %1423 = vmatpush1.msra.mxu0 0.0
          %1424 = vmatprep.subr.mxu0 0.0
          %1425 = vmatpush1.msra.mxu0 0.0
          %1426 = vmatprep.subr.mxu0 0.0
          %1427 = vmatpush1.msra.mxu0 0.0
          %1428 = vmatprep.subr.mxu0 %v1388
          %1429 = vmatpush1.msra.mxu0 %v1387
          %1430 = vmatprep.subr.mxu0 %v1372
          %1431 = vmatpush1.msra.mxu0 %v1371
          %1432 = vmatprep.subr.mxu0 %v1356
          %1433 = vmatpush1.msra.mxu0 %v1355
          %1434 = vmatprep.subr.mxu0 %v1340
          %1435 = vmatpush1.msra.mxu0 %v1339
          %1436 = vmatprep.subr.mxu0 %v1324
          %1437 = vmatpush1.msra.mxu0 %v1323
          %1438 = vmatprep.subr.mxu0 %v1308
          %1439 = vmatpush1.msra.mxu0 %v1307
          %1440 = vmatprep.subr.mxu0 %v1292
          %1441 = vmatpush1.msra.mxu0 %v1291
          %1442 = vmatprep.subr.mxu0 %v1276
          %1443 = vmatpush1.msra.mxu0 %v1275
          %1444 = vmatprep.subr.mxu0 0.0
          %1445 = vmatpush2.msra.mxu0 0.0
          %1446 = vmatprep.subr.mxu0 0.0
          %1447 = vmatpush2.msra.mxu0 0.0
          %1448 = vmatprep.subr.mxu0 0.0
          %1449 = vmatpush2.msra.mxu0 0.0
          %1450 = vmatprep.subr.mxu0 0.0
          %1451 = vmatpush2.msra.mxu0 0.0
          %1452 = vmatprep.subr.mxu0 0.0
          %1453 = vmatpush2.msra.mxu0 0.0
          %1454 = vmatprep.subr.mxu0 0.0
          %1455 = vmatpush2.msra.mxu0 0.0
          %1456 = vmatprep.subr.mxu0 0.0
          %1457 = vmatpush2.msra.mxu0 0.0
          %1458 = vmatprep.subr.mxu0 0.0
          %1459 = vmatpush2.msra.mxu0 0.0
          %1460 = vmatprep.subr.mxu0 0.0
          %1461 = vmatpush2.msra.mxu0 0.0
          %1462 = vmatprep.subr.mxu0 0.0
          %1463 = vmatpush2.msra.mxu0 0.0
          %1464 = vmatprep.subr.mxu0 0.0
          %1465 = vmatpush2.msra.mxu0 0.0
          %1466 = vmatprep.subr.mxu0 0.0
          %1467 = vmatpush2.msra.mxu0 0.0
          %1468 = vmatprep.subr.mxu0 0.0
          %1469 = vmatpush2.msra.mxu0 0.0
          %1470 = vmatprep.subr.mxu0 0.0
          %1471 = vmatpush2.msra.mxu0 0.0
          %1472 = vmatprep.subr.mxu0 0.0
          %1473 = vmatpush2.msra.mxu0 0.0
          %1474 = vmatprep.subr.mxu0 0.0
          %1475 = vmatpush2.msra.mxu0 0.0
          %1476 = vmatprep.mubr.f32.mxu0 0.0
          %1477 = vmatmul.mubr.f32.gmra.mxu0 %v1410
          %v1478 = vpop.f32.mrf.mxu0
          %v1479 = vadd.f32 %v1406, %v1478
          %v1480 = vpop.f32.mrf.mxu0
          %v1481 = vadd.f32 %v1406, %v1480
          %1482 = vdwg.mxu0
          %1483 = vmatprep.subr.mxu0 0.0
          %1484 = vmatpush1.msra.mxu0 0.0
          %1485 = vmatprep.subr.mxu0 0.0
          %1486 = vmatpush1.msra.mxu0 0.0
          %1487 = vmatprep.subr.mxu0 0.0
          %1488 = vmatpush1.msra.mxu0 0.0
          %1489 = vmatprep.subr.mxu0 0.0
          %1490 = vmatpush1.msra.mxu0 0.0
          %1491 = vmatprep.subr.mxu0 0.0
          %1492 = vmatpush1.msra.mxu0 0.0
          %1493 = vmatprep.subr.mxu0 0.0
          %1494 = vmatpush1.msra.mxu0 0.0
          %1495 = vmatprep.subr.mxu0 0.0
          %1496 = vmatpush1.msra.mxu0 0.0
          %1497 = vmatprep.subr.mxu0 0.0
          %1498 = vmatpush1.msra.mxu0 0.0
          %1499 = vmatprep.subr.mxu0 %v1390
          %1500 = vmatpush1.msra.mxu0 %v1389
          %1501 = vmatprep.subr.mxu0 %v1374
          %1502 = vmatpush1.msra.mxu0 %v1373
          %1503 = vmatprep.subr.mxu0 %v1358
          %1504 = vmatpush1.msra.mxu0 %v1357
          %1505 = vmatprep.subr.mxu0 %v1342
          %1506 = vmatpush1.msra.mxu0 %v1341
          %1507 = vmatprep.subr.mxu0 %v1326
          %1508 = vmatpush1.msra.mxu0 %v1325
          %1509 = vmatprep.subr.mxu0 %v1310
          %1510 = vmatpush1.msra.mxu0 %v1309
          %1511 = vmatprep.subr.mxu0 %v1294
          %1512 = vmatpush1.msra.mxu0 %v1293
          %1513 = vmatprep.subr.mxu0 %v1278
          %1514 = vmatpush1.msra.mxu0 %v1277
          %1515 = vmatprep.subr.mxu0 0.0
          %1516 = vmatpush2.msra.mxu0 0.0
          %1517 = vmatprep.subr.mxu0 0.0
          %1518 = vmatpush2.msra.mxu0 0.0
          %1519 = vmatprep.subr.mxu0 0.0
          %1520 = vmatpush2.msra.mxu0 0.0
          %1521 = vmatprep.subr.mxu0 0.0
          %1522 = vmatpush2.msra.mxu0 0.0
          %1523 = vmatprep.subr.mxu0 0.0
          %1524 = vmatpush2.msra.mxu0 0.0
          %1525 = vmatprep.subr.mxu0 0.0
          %1526 = vmatpush2.msra.mxu0 0.0
          %1527 = vmatprep.subr.mxu0 0.0
          %1528 = vmatpush2.msra.mxu0 0.0
          %1529 = vmatprep.subr.mxu0 0.0
          %1530 = vmatpush2.msra.mxu0 0.0
          %1531 = vmatprep.subr.mxu0 0.0
          %1532 = vmatpush2.msra.mxu0 0.0
          %1533 = vmatprep.subr.mxu0 0.0
          %1534 = vmatpush2.msra.mxu0 0.0
          %1535 = vmatprep.subr.mxu0 0.0
          %1536 = vmatpush2.msra.mxu0 0.0
          %1537 = vmatprep.subr.mxu0 0.0
          %1538 = vmatpush2.msra.mxu0 0.0
          %1539 = vmatprep.subr.mxu0 0.0
          %1540 = vmatpush2.msra.mxu0 0.0
          %1541 = vmatprep.subr.mxu0 0.0
          %1542 = vmatpush2.msra.mxu0 0.0
          %1543 = vmatprep.subr.mxu0 0.0
          %1544 = vmatpush2.msra.mxu0 0.0
          %1545 = vmatprep.subr.mxu0 0.0
          %1546 = vmatpush2.msra.mxu0 0.0
          %1547 = vmatprep.mubr.f32.mxu0 0.0
          %1548 = vmatmul.mubr.f32.gmra.mxu0 %v1410
          %v1549 = vpop.f32.mrf.mxu0
          %v1550 = vadd.f32 %v1406, %v1549
          %v1551 = vpop.f32.mrf.mxu0
          %v1552 = vadd.f32 %v1406, %v1551
          %1553 = vdwg.mxu0
          %1554 = vmatprep.subr.mxu0 0.0
          %1555 = vmatpush1.msra.mxu0 0.0
          %1556 = vmatprep.subr.mxu0 0.0
          %1557 = vmatpush1.msra.mxu0 0.0
          %1558 = vmatprep.subr.mxu0 0.0
          %1559 = vmatpush1.msra.mxu0 0.0
          %1560 = vmatprep.subr.mxu0 0.0
          %1561 = vmatpush1.msra.mxu0 0.0
          %1562 = vmatprep.subr.mxu0 0.0
          %1563 = vmatpush1.msra.mxu0 0.0
          %1564 = vmatprep.subr.mxu0 0.0
          %1565 = vmatpush1.msra.mxu0 0.0
          %1566 = vmatprep.subr.mxu0 0.0
          %1567 = vmatpush1.msra.mxu0 0.0
          %1568 = vmatprep.subr.mxu0 0.0
          %1569 = vmatpush1.msra.mxu0 0.0
          %1570 = vmatprep.subr.mxu0 %v1392
          %1571 = vmatpush1.msra.mxu0 %v1391
          %1572 = vmatprep.subr.mxu0 %v1376
          %1573 = vmatpush1.msra.mxu0 %v1375
          %1574 = vmatprep.subr.mxu0 %v1360
          %1575 = vmatpush1.msra.mxu0 %v1359
          %1576 = vmatprep.subr.mxu0 %v1344
          %1577 = vmatpush1.msra.mxu0 %v1343
          %1578 = vmatprep.subr.mxu0 %v1328
          %1579 = vmatpush1.msra.mxu0 %v1327
          %1580 = vmatprep.subr.mxu0 %v1312
          %1581 = vmatpush1.msra.mxu0 %v1311
          %1582 = vmatprep.subr.mxu0 %v1296
          %1583 = vmatpush1.msra.mxu0 %v1295
          %1584 = vmatprep.subr.mxu0 %v1280
          %1585 = vmatpush1.msra.mxu0 %v1279
          %1586 = vmatprep.subr.mxu0 0.0
          %1587 = vmatpush2.msra.mxu0 0.0
          %1588 = vmatprep.subr.mxu0 0.0
          %1589 = vmatpush2.msra.mxu0 0.0
          %1590 = vmatprep.subr.mxu0 0.0
          %1591 = vmatpush2.msra.mxu0 0.0
          %1592 = vmatprep.subr.mxu0 0.0
          %1593 = vmatpush2.msra.mxu0 0.0
          %1594 = vmatprep.subr.mxu0 0.0
          %1595 = vmatpush2.msra.mxu0 0.0
          %1596 = vmatprep.subr.mxu0 0.0
          %1597 = vmatpush2.msra.mxu0 0.0
          %1598 = vmatprep.subr.mxu0 0.0
          %1599 = vmatpush2.msra.mxu0 0.0
          %1600 = vmatprep.subr.mxu0 0.0
          %1601 = vmatpush2.msra.mxu0 0.0
          %1602 = vmatprep.subr.mxu0 0.0
          %1603 = vmatpush2.msra.mxu0 0.0
          %1604 = vmatprep.subr.mxu0 0.0
          %1605 = vmatpush2.msra.mxu0 0.0
          %1606 = vmatprep.subr.mxu0 0.0
          %1607 = vmatpush2.msra.mxu0 0.0
          %1608 = vmatprep.subr.mxu0 0.0
          %1609 = vmatpush2.msra.mxu0 0.0
          %1610 = vmatprep.subr.mxu0 0.0
          %1611 = vmatpush2.msra.mxu0 0.0
          %1612 = vmatprep.subr.mxu0 0.0
          %1613 = vmatpush2.msra.mxu0 0.0
          %1614 = vmatprep.subr.mxu0 0.0
          %1615 = vmatpush2.msra.mxu0 0.0
          %1616 = vmatprep.subr.mxu0 0.0
          %1617 = vmatpush2.msra.mxu0 0.0
          %1618 = vmatprep.mubr.f32.mxu0 0.0
          %1619 = vmatmul.mubr.f32.gmra.mxu0 %v1410
          %v1620 = vpop.f32.mrf.mxu0
          %v1621 = vadd.f32 %v1406, %v1620
          %v1622 = vpop.f32.mrf.mxu0
          %v1623 = vadd.f32 %v1406, %v1622
          %1624 = vdwg.mxu0
          %1625 = vmatprep.subr.mxu0 0.0
          %1626 = vmatpush1.msra.mxu0 0.0
          %1627 = vmatprep.subr.mxu0 0.0
          %1628 = vmatpush1.msra.mxu0 0.0
          %1629 = vmatprep.subr.mxu0 0.0
          %1630 = vmatpush1.msra.mxu0 0.0
          %1631 = vmatprep.subr.mxu0 0.0
          %1632 = vmatpush1.msra.mxu0 0.0
          %1633 = vmatprep.subr.mxu0 0.0
          %1634 = vmatpush1.msra.mxu0 0.0
          %1635 = vmatprep.subr.mxu0 0.0
          %1636 = vmatpush1.msra.mxu0 0.0
          %1637 = vmatprep.subr.mxu0 0.0
          %1638 = vmatpush1.msra.mxu0 0.0
          %1639 = vmatprep.subr.mxu0 0.0
          %1640 = vmatpush1.msra.mxu0 0.0
          %1641 = vmatprep.subr.mxu0 %v1394
          %1642 = vmatpush1.msra.mxu0 %v1393
          %1643 = vmatprep.subr.mxu0 %v1378
          %1644 = vmatpush1.msra.mxu0 %v1377
          %1645 = vmatprep.subr.mxu0 %v1362
          %1646 = vmatpush1.msra.mxu0 %v1361
          %1647 = vmatprep.subr.mxu0 %v1346
          %1648 = vmatpush1.msra.mxu0 %v1345
          %1649 = vmatprep.subr.mxu0 %v1330
          %1650 = vmatpush1.msra.mxu0 %v1329
          %1651 = vmatprep.subr.mxu0 %v1314
          %1652 = vmatpush1.msra.mxu0 %v1313
          %1653 = vmatprep.subr.mxu0 %v1298
          %1654 = vmatpush1.msra.mxu0 %v1297
          %1655 = vmatprep.subr.mxu0 %v1282
          %1656 = vmatpush1.msra.mxu0 %v1281
          %1657 = vmatprep.subr.mxu0 0.0
          %1658 = vmatpush2.msra.mxu0 0.0
          %1659 = vmatprep.subr.mxu0 0.0
          %1660 = vmatpush2.msra.mxu0 0.0
          %1661 = vmatprep.subr.mxu0 0.0
          %1662 = vmatpush2.msra.mxu0 0.0
          %1663 = vmatprep.subr.mxu0 0.0
          %1664 = vmatpush2.msra.mxu0 0.0
          %1665 = vmatprep.subr.mxu0 0.0
          %1666 = vmatpush2.msra.mxu0 0.0
          %1667 = vmatprep.subr.mxu0 0.0
          %1668 = vmatpush2.msra.mxu0 0.0
          %1669 = vmatprep.subr.mxu0 0.0
          %1670 = vmatpush2.msra.mxu0 0.0
          %1671 = vmatprep.subr.mxu0 0.0
          %1672 = vmatpush2.msra.mxu0 0.0
          %1673 = vmatprep.subr.mxu0 0.0
          %1674 = vmatpush2.msra.mxu0 0.0
          %1675 = vmatprep.subr.mxu0 0.0
          %1676 = vmatpush2.msra.mxu0 0.0
          %1677 = vmatprep.subr.mxu0 0.0
          %1678 = vmatpush2.msra.mxu0 0.0
          %1679 = vmatprep.subr.mxu0 0.0
          %1680 = vmatpush2.msra.mxu0 0.0
          %1681 = vmatprep.subr.mxu0 0.0
          %1682 = vmatpush2.msra.mxu0 0.0
          %1683 = vmatprep.subr.mxu0 0.0
          %1684 = vmatpush2.msra.mxu0 0.0
          %1685 = vmatprep.subr.mxu0 0.0
          %1686 = vmatpush2.msra.mxu0 0.0
          %1687 = vmatprep.subr.mxu0 0.0
          %1688 = vmatpush2.msra.mxu0 0.0
          %1689 = vmatprep.mubr.f32.mxu0 0.0
          %1690 = vmatmul.mubr.f32.gmra.mxu0 %v1410
          %v1691 = vpop.f32.mrf.mxu0
          %v1692 = vadd.f32 %v1406, %v1691
          %v1693 = vpop.f32.mrf.mxu0
          %v1694 = vadd.f32 %v1406, %v1693
          %1695 = vdwg.mxu0
          %1696 = vmatprep.subr.mxu0 0.0
          %1697 = vmatpush1.msra.mxu0 0.0
          %1698 = vmatprep.subr.mxu0 0.0
          %1699 = vmatpush1.msra.mxu0 0.0
          %1700 = vmatprep.subr.mxu0 0.0
          %1701 = vmatpush1.msra.mxu0 0.0
          %1702 = vmatprep.subr.mxu0 0.0
          %1703 = vmatpush1.msra.mxu0 0.0
          %1704 = vmatprep.subr.mxu0 0.0
          %1705 = vmatpush1.msra.mxu0 0.0
          %1706 = vmatprep.subr.mxu0 0.0
          %1707 = vmatpush1.msra.mxu0 0.0
          %1708 = vmatprep.subr.mxu0 0.0
          %1709 = vmatpush1.msra.mxu0 0.0
          %1710 = vmatprep.subr.mxu0 0.0
          %1711 = vmatpush1.msra.mxu0 0.0
          %1712 = vmatprep.subr.mxu0 %v1396
          %1713 = vmatpush1.msra.mxu0 %v1395
          %1714 = vmatprep.subr.mxu0 %v1380
          %1715 = vmatpush1.msra.mxu0 %v1379
          %1716 = vmatprep.subr.mxu0 %v1364
          %1717 = vmatpush1.msra.mxu0 %v1363
          %1718 = vmatprep.subr.mxu0 %v1348
          %1719 = vmatpush1.msra.mxu0 %v1347
          %1720 = vmatprep.subr.mxu0 %v1332
          %1721 = vmatpush1.msra.mxu0 %v1331
          %1722 = vmatprep.subr.mxu0 %v1316
          %1723 = vmatpush1.msra.mxu0 %v1315
          %1724 = vmatprep.subr.mxu0 %v1300
          %1725 = vmatpush1.msra.mxu0 %v1299
          %1726 = vmatprep.subr.mxu0 %v1284
          %1727 = vmatpush1.msra.mxu0 %v1283
          %1728 = vmatprep.subr.mxu0 0.0
          %1729 = vmatpush2.msra.mxu0 0.0
          %1730 = vmatprep.subr.mxu0 0.0
          %1731 = vmatpush2.msra.mxu0 0.0
          %1732 = vmatprep.subr.mxu0 0.0
          %1733 = vmatpush2.msra.mxu0 0.0
          %1734 = vmatprep.subr.mxu0 0.0
          %1735 = vmatpush2.msra.mxu0 0.0
          %1736 = vmatprep.subr.mxu0 0.0
          %1737 = vmatpush2.msra.mxu0 0.0
          %1738 = vmatprep.subr.mxu0 0.0
          %1739 = vmatpush2.msra.mxu0 0.0
          %1740 = vmatprep.subr.mxu0 0.0
          %1741 = vmatpush2.msra.mxu0 0.0
          %1742 = vmatprep.subr.mxu0 0.0
          %1743 = vmatpush2.msra.mxu0 0.0
          %1744 = vmatprep.subr.mxu0 0.0
          %1745 = vmatpush2.msra.mxu0 0.0
          %1746 = vmatprep.subr.mxu0 0.0
          %1747 = vmatpush2.msra.mxu0 0.0
          %1748 = vmatprep.subr.mxu0 0.0
          %1749 = vmatpush2.msra.mxu0 0.0
          %1750 = vmatprep.subr.mxu0 0.0
          %1751 = vmatpush2.msra.mxu0 0.0
          %1752 = vmatprep.subr.mxu0 0.0
          %1753 = vmatpush2.msra.mxu0 0.0
          %1754 = vmatprep.subr.mxu0 0.0
          %1755 = vmatpush2.msra.mxu0 0.0
          %1756 = vmatprep.subr.mxu0 0.0
          %1757 = vmatpush2.msra.mxu0 0.0
          %1758 = vmatprep.subr.mxu0 0.0
          %1759 = vmatpush2.msra.mxu0 0.0
          %1760 = vmatprep.mubr.f32.mxu0 0.0
          %1761 = vmatmul.mubr.f32.gmra.mxu0 %v1410
          %v1762 = vpop.f32.mrf.mxu0
          %v1763 = vadd.f32 %v1406, %v1762
          %v1764 = vpop.f32.mrf.mxu0
          %v1765 = vadd.f32 %v1406, %v1764
          %1766 = vdwg.mxu0
          %1767 = vmatprep.subr.mxu0 0.0
          %1768 = vmatpush1.msra.mxu0 0.0
          %1769 = vmatprep.subr.mxu0 0.0
          %1770 = vmatpush1.msra.mxu0 0.0
          %1771 = vmatprep.subr.mxu0 0.0
          %1772 = vmatpush1.msra.mxu0 0.0
          %1773 = vmatprep.subr.mxu0 0.0
          %1774 = vmatpush1.msra.mxu0 0.0
          %1775 = vmatprep.subr.mxu0 0.0
          %1776 = vmatpush1.msra.mxu0 0.0
          %1777 = vmatprep.subr.mxu0 0.0
          %1778 = vmatpush1.msra.mxu0 0.0
          %1779 = vmatprep.subr.mxu0 0.0
          %1780 = vmatpush1.msra.mxu0 0.0
          %1781 = vmatprep.subr.mxu0 0.0
          %1782 = vmatpush1.msra.mxu0 0.0
          %1783 = vmatprep.subr.mxu0 %v1398
          %1784 = vmatpush1.msra.mxu0 %v1397
          %1785 = vmatprep.subr.mxu0 %v1382
          %1786 = vmatpush1.msra.mxu0 %v1381
          %1787 = vmatprep.subr.mxu0 %v1366
          %1788 = vmatpush1.msra.mxu0 %v1365
          %1789 = vmatprep.subr.mxu0 %v1350
          %1790 = vmatpush1.msra.mxu0 %v1349
          %1791 = vmatprep.subr.mxu0 %v1334
          %1792 = vmatpush1.msra.mxu0 %v1333
          %1793 = vmatprep.subr.mxu0 %v1318
          %1794 = vmatpush1.msra.mxu0 %v1317
          %1795 = vmatprep.subr.mxu0 %v1302
          %1796 = vmatpush1.msra.mxu0 %v1301
          %1797 = vmatprep.subr.mxu0 %v1286
          %1798 = vmatpush1.msra.mxu0 %v1285
          %1799 = vmatprep.subr.mxu0 0.0
          %1800 = vmatpush2.msra.mxu0 0.0
          %1801 = vmatprep.subr.mxu0 0.0
          %1802 = vmatpush2.msra.mxu0 0.0
          %1803 = vmatprep.subr.mxu0 0.0
          %1804 = vmatpush2.msra.mxu0 0.0
          %1805 = vmatprep.subr.mxu0 0.0
          %1806 = vmatpush2.msra.mxu0 0.0
          %1807 = vmatprep.subr.mxu0 0.0
          %1808 = vmatpush2.msra.mxu0 0.0
          %1809 = vmatprep.subr.mxu0 0.0
          %1810 = vmatpush2.msra.mxu0 0.0
          %1811 = vmatprep.subr.mxu0 0.0
          %1812 = vmatpush2.msra.mxu0 0.0
          %1813 = vmatprep.subr.mxu0 0.0
          %1814 = vmatpush2.msra.mxu0 0.0
          %1815 = vmatprep.subr.mxu0 0.0
          %1816 = vmatpush2.msra.mxu0 0.0
          %1817 = vmatprep.subr.mxu0 0.0
          %1818 = vmatpush2.msra.mxu0 0.0
          %1819 = vmatprep.subr.mxu0 0.0
          %1820 = vmatpush2.msra.mxu0 0.0
          %1821 = vmatprep.subr.mxu0 0.0
          %1822 = vmatpush2.msra.mxu0 0.0
          %1823 = vmatprep.subr.mxu0 0.0
          %1824 = vmatpush2.msra.mxu0 0.0
          %1825 = vmatprep.subr.mxu0 0.0
          %1826 = vmatpush2.msra.mxu0 0.0
          %1827 = vmatprep.subr.mxu0 0.0
          %1828 = vmatpush2.msra.mxu0 0.0
          %1829 = vmatprep.subr.mxu0 0.0
          %1830 = vmatpush2.msra.mxu0 0.0
          %1831 = vmatprep.mubr.f32.mxu0 0.0
          %1832 = vmatmul.mubr.f32.gmra.mxu0 %v1410
          %v1833 = vpop.f32.mrf.mxu0
          %v1834 = vadd.f32 %v1406, %v1833
          %v1835 = vpop.f32.mrf.mxu0
          %v1836 = vadd.f32 %v1406, %v1835
          %1837 = vdwg.mxu0
          %1838 = vmatprep.subr.mxu0 0.0
          %1839 = vmatpush1.msra.mxu0 0.0
          %1840 = vmatprep.subr.mxu0 0.0
          %1841 = vmatpush1.msra.mxu0 0.0
          %1842 = vmatprep.subr.mxu0 0.0
          %1843 = vmatpush1.msra.mxu0 0.0
          %1844 = vmatprep.subr.mxu0 0.0
          %1845 = vmatpush1.msra.mxu0 0.0
          %1846 = vmatprep.subr.mxu0 0.0
          %1847 = vmatpush1.msra.mxu0 0.0
          %1848 = vmatprep.subr.mxu0 0.0
          %1849 = vmatpush1.msra.mxu0 0.0
          %1850 = vmatprep.subr.mxu0 0.0
          %1851 = vmatpush1.msra.mxu0 0.0
          %1852 = vmatprep.subr.mxu0 0.0
          %1853 = vmatpush1.msra.mxu0 0.0
          %1854 = vmatprep.subr.mxu0 %v1400
          %1855 = vmatpush1.msra.mxu0 %v1399
          %1856 = vmatprep.subr.mxu0 %v1384
          %1857 = vmatpush1.msra.mxu0 %v1383
          %1858 = vmatprep.subr.mxu0 %v1368
          %1859 = vmatpush1.msra.mxu0 %v1367
          %1860 = vmatprep.subr.mxu0 %v1352
          %1861 = vmatpush1.msra.mxu0 %v1351
          %1862 = vmatprep.subr.mxu0 %v1336
          %1863 = vmatpush1.msra.mxu0 %v1335
          %1864 = vmatprep.subr.mxu0 %v1320
          %1865 = vmatpush1.msra.mxu0 %v1319
          %1866 = vmatprep.subr.mxu0 %v1304
          %1867 = vmatpush1.msra.mxu0 %v1303
          %1868 = vmatprep.subr.mxu0 %v1288
          %1869 = vmatpush1.msra.mxu0 %v1287
          %1870 = vmatprep.subr.mxu0 0.0
          %1871 = vmatpush2.msra.mxu0 0.0
          %1872 = vmatprep.subr.mxu0 0.0
          %1873 = vmatpush2.msra.mxu0 0.0
          %1874 = vmatprep.subr.mxu0 0.0
          %1875 = vmatpush2.msra.mxu0 0.0
          %1876 = vmatprep.subr.mxu0 0.0
          %1877 = vmatpush2.msra.mxu0 0.0
          %1878 = vmatprep.subr.mxu0 0.0
          %1879 = vmatpush2.msra.mxu0 0.0
          %1880 = vmatprep.subr.mxu0 0.0
          %1881 = vmatpush2.msra.mxu0 0.0
          %1882 = vmatprep.subr.mxu0 0.0
          %1883 = vmatpush2.msra.mxu0 0.0
          %1884 = vmatprep.subr.mxu0 0.0
          %1885 = vmatpush2.msra.mxu0 0.0
          %1886 = vmatprep.subr.mxu0 0.0
          %1887 = vmatpush2.msra.mxu0 0.0
          %1888 = vmatprep.subr.mxu0 0.0
          %1889 = vmatpush2.msra.mxu0 0.0
          %1890 = vmatprep.subr.mxu0 0.0
          %1891 = vmatpush2.msra.mxu0 0.0
          %1892 = vmatprep.subr.mxu0 0.0
          %1893 = vmatpush2.msra.mxu0 0.0
          %1894 = vmatprep.subr.mxu0 0.0
          %1895 = vmatpush2.msra.mxu0 0.0
          %1896 = vmatprep.subr.mxu0 0.0
          %1897 = vmatpush2.msra.mxu0 0.0
          %1898 = vmatprep.subr.mxu0 0.0
          %1899 = vmatpush2.msra.mxu0 0.0
          %1900 = vmatprep.subr.mxu0 0.0
          %1901 = vmatpush2.msra.mxu0 0.0
          %1902 = vmatprep.mubr.f32.mxu0 0.0
          %1903 = vmatmul.mubr.f32.gmra.mxu0 %v1410
          %v1904 = vpop.f32.mrf.mxu0
          %v1905 = vadd.f32 %v1406, %v1904
          %v1906 = vpop.f32.mrf.mxu0
          %v1907 = vadd.f32 %v1406, %v1906
          %1908 = vdwg.mxu0
          %1909 = vmatprep.subr.mxu0 0.0
          %1910 = vmatpush1.msra.mxu0 0.0
          %1911 = vmatprep.subr.mxu0 0.0
          %1912 = vmatpush1.msra.mxu0 0.0
          %1913 = vmatprep.subr.mxu0 0.0
          %1914 = vmatpush1.msra.mxu0 0.0
          %1915 = vmatprep.subr.mxu0 0.0
          %1916 = vmatpush1.msra.mxu0 0.0
          %1917 = vmatprep.subr.mxu0 0.0
          %1918 = vmatpush1.msra.mxu0 0.0
          %1919 = vmatprep.subr.mxu0 0.0
          %1920 = vmatpush1.msra.mxu0 0.0
          %1921 = vmatprep.subr.mxu0 0.0
          %1922 = vmatpush1.msra.mxu0 0.0
          %1923 = vmatprep.subr.mxu0 0.0
          %1924 = vmatpush1.msra.mxu0 0.0
          %1925 = vmatprep.subr.mxu0 %v1402
          %1926 = vmatpush1.msra.mxu0 %v1401
          %1927 = vmatprep.subr.mxu0 %v1386
          %1928 = vmatpush1.msra.mxu0 %v1385
          %1929 = vmatprep.subr.mxu0 %v1370
          %1930 = vmatpush1.msra.mxu0 %v1369
          %1931 = vmatprep.subr.mxu0 %v1354
          %1932 = vmatpush1.msra.mxu0 %v1353
          %1933 = vmatprep.subr.mxu0 %v1338
          %1934 = vmatpush1.msra.mxu0 %v1337
          %1935 = vmatprep.subr.mxu0 %v1322
          %1936 = vmatpush1.msra.mxu0 %v1321
          %1937 = vmatprep.subr.mxu0 %v1306
          %1938 = vmatpush1.msra.mxu0 %v1305
          %1939 = vmatprep.subr.mxu0 %v1290
          %1940 = vmatpush1.msra.mxu0 %v1289
          %1941 = vmatprep.subr.mxu0 0.0
          %1942 = vmatpush2.msra.mxu0 0.0
          %1943 = vmatprep.subr.mxu0 0.0
          %1944 = vmatpush2.msra.mxu0 0.0
          %1945 = vmatprep.subr.mxu0 0.0
          %1946 = vmatpush2.msra.mxu0 0.0
          %1947 = vmatprep.subr.mxu0 0.0
          %1948 = vmatpush2.msra.mxu0 0.0
          %1949 = vmatprep.subr.mxu0 0.0
          %1950 = vmatpush2.msra.mxu0 0.0
          %1951 = vmatprep.subr.mxu0 0.0
          %1952 = vmatpush2.msra.mxu0 0.0
          %1953 = vmatprep.subr.mxu0 0.0
          %1954 = vmatpush2.msra.mxu0 0.0
          %1955 = vmatprep.subr.mxu0 0.0
          %1956 = vmatpush2.msra.mxu0 0.0
          %1957 = vmatprep.subr.mxu0 0.0
          %1958 = vmatpush2.msra.mxu0 0.0
          %1959 = vmatprep.subr.mxu0 0.0
          %1960 = vmatpush2.msra.mxu0 0.0
          %1961 = vmatprep.subr.mxu0 0.0
          %1962 = vmatpush2.msra.mxu0 0.0
          %1963 = vmatprep.subr.mxu0 0.0
          %1964 = vmatpush2.msra.mxu0 0.0
          %1965 = vmatprep.subr.mxu0 0.0
          %1966 = vmatpush2.msra.mxu0 0.0
          %1967 = vmatprep.subr.mxu0 0.0
          %1968 = vmatpush2.msra.mxu0 0.0
          %1969 = vmatprep.subr.mxu0 0.0
          %1970 = vmatpush2.msra.mxu0 0.0
          %1971 = vmatprep.subr.mxu0 0.0
          %1972 = vmatpush2.msra.mxu0 0.0
          %1973 = vmatprep.mubr.f32.mxu0 0.0
          %1974 = vmatmul.mubr.f32.gmra.mxu0 %v1410
          %v1975 = vpop.f32.mrf.mxu0
          %v1976 = vadd.f32 %v1406, %v1975
          %v1977 = vpop.f32.mrf.mxu0
          %v1978 = vadd.f32 %v1406, %v1977
          %1979 = vdwg.mxu0
          %s1980 = smul.addr %s286, 8
          %s1981 = scalar_lea.vmem %s258, %s1980 [#allocation5]
          %1982 = vst [vmem:[%s1981] sm:$0xff] %v1479
          %1983 = vst [vmem:[%s1981 + $0x8] sm:$0xff] %v1481
          %1984 = vst [vmem:[%s1981 + $0x10] sm:$0xff] %v1550
          %1985 = vst [vmem:[%s1981 + $0x18] sm:$0xff] %v1552
          %1986 = vst [vmem:[%s1981 + $0x20] sm:$0xff] %v1621
          %1987 = vst [vmem:[%s1981 + $0x28] sm:$0xff] %v1623
          %1988 = vst [vmem:[%s1981 + $0x30] sm:$0xff] %v1692
          %1989 = vst [vmem:[%s1981 + $0x38] sm:$0xff] %v1694
          %1990 = vst [vmem:[%s1981 + $0x40] sm:$0xff] %v1763
          %1991 = vst [vmem:[%s1981 + $0x48] sm:$0xff] %v1765
          %1992 = vst [vmem:[%s1981 + $0x50] sm:$0xff] %v1834
          %1993 = vst [vmem:[%s1981 + $0x58] sm:$0xff] %v1836
          %1994 = vst [vmem:[%s1981 + $0x60] sm:$0xff] %v1905
          %1995 = vst [vmem:[%s1981 + $0x68] sm:$0xff] %v1907
          %1996 = vst [vmem:[%s1981 + $0x70] sm:$0xff] %v1976
          %1997 = vst [vmem:[%s1981 + $0x78] sm:$0xff] %v1978
        $region49: #{tpu_custom_call.1} parent=39 // loop_footer
          %s284 = sadd.s32 1, %s280
        $region50: #{tpu_custom_call.1} parent=39 // loop_footer_branch
          %279 = sbr.rel target = $region46
        $region51: #{tpu_custom_call.1} parent=39 // loop_exit
          _
        %s1998 = sand.u32 %s156, 1
        %s1999 = scalar_lea.sflag [#allocation4], %s1998
        %s2000 = sand.u32 %s156, 1
        %s2001 = smul.addr %s2000, 256
        %s2002 = scalar_lea.vmem [#allocation5], %s2001
        // Predicated region
        $region52: #{tpu_custom_call.1} parent=39 // pred_check
          %p2003 = pneg %p166
        $region53: #{tpu_custom_call.1} parent=39 // pred_check_branch
          %2005 = sbr.rel (%p2003) target = $region55
        $region54: #{tpu_custom_call.1} parent=39 // pred_region
          %s2006 = smul.u32 32, %s27
          %s2008 = ssub.s32 4096, 4096
          %2009 = vsyncadd %s1999, %s2008
          %s2010 = smul.addr %s26, 256
          %s2011 = sadd.s32 %s2006, %s2010
          %s2012 = smul.addr %s2011, 128
          %s2013 = scalar_lea.hbm %s5, %s2012
          %s2015 = sshll.u32 %s2002, 4
          %s2016 = int_to_ptr.vmem [resolvable:$true] %s2015
          %2018 = dma.vmem_to_hbm [thread:$0]  %s2016, 4096, %s2013, %s1999
        $region55: #{tpu_custom_call.1} parent=39 // pred_fallthru
          _
      $region40: #{tpu_custom_call.1} parent=5 // pred_fallthru
        _
      %p2019 = scmp.le.s32.totalorder 2, %s17
      // Predicated region
      $region56: #{tpu_custom_call.1} parent=5 // pred_check
        %p2020 = pneg %p2019
      $region57: #{tpu_custom_call.1} parent=5 // pred_check_branch
        %2022 = sbr.rel (%p2020) target = $region59
      $region58: #{tpu_custom_call.1} parent=5 // pred_region
        %s2023 = ssub.s32 %s17, 2
        // Predicated region
        $region60: #{tpu_custom_call.1} parent=58 // pred_check
          %p2024 = pneg %p172
        $region61: #{tpu_custom_call.1} parent=58 // pred_check_branch
          %2026 = sbr.rel (%p2024) target = $region63
        $region62: #{tpu_custom_call.1} parent=58 // pred_region
          %s2027 = sand.u32 %s157, 1
          %s2028 = scalar_lea.sflag [#allocation4], %s2027
          %s2029 = sand.u32 %s157, 1
          %s2030 = smul.addr %s2029, 256
          %s2031 = scalar_lea.vmem [#allocation5], %s2030
          %2032 = dma.done %s2028, 4096
        $region63: #{tpu_custom_call.1} parent=58 // pred_fallthru
          _
      $region59: #{tpu_custom_call.1} parent=5 // pred_fallthru
        _
    $region6: #{tpu_custom_call.1} parent=1 // loop_footer
      %s21 = sadd.s32 1, %s17
    $region7: #{tpu_custom_call.1} parent=1 // loop_footer_branch
      %16 = sbr.rel target = $region3
    $region8: #{tpu_custom_call.1} parent=1 // loop_exit
      _
    %2033 = vsyncpa [#allocation3], 1
    %s2034 = scalar_lea.sflag [#allocation3], 1
    %2035 = vsyncpa %s2034, 1
    %2036 = vsyncpa [#allocation4], 1
    %s2037 = scalar_lea.sflag [#allocation4], 1
    %2038 = vsyncpa %s2037, 1

</llo_original>
